<compile_context>
chip_gen: v7x
topology: tpu7x:2x2x1
jax: 0.10.0
libtpu: 0.0.40
codegen_flags: <defaults>
</compile_context>

<pallas_src>
import jax
import jax.numpy as jnp
from jax.experimental import pallas as pl
from jax.experimental.pallas import tpu as pltpu


# ---------------------------------------------------------------------------
# Kernel: 3x3 conv (stride 1, pad 1) with the channel-repeat residual folded
# into the centre tap.  One (batch, row-tile) per grid step, ONE matmul.
# ---------------------------------------------------------------------------
def _conv3x3_residual_kernel(x_ref, xtop_ref, xbot_ref, w_ref, b_ref,
                             o_ref, pad_ref):
    # x_ref   : (1, TH, W, Cin)   body rows of the current tile
    # xtop_ref: (1, 1,  W, Cin)   row above the tile (zeroed at t == 0)
    # xbot_ref: (1, 1,  W, Cin)   row below the tile (zeroed at t == last)
    # w_ref   : (9*Cin, Cout)     (dy, dx, cin)-packed weights, residual folded
    # b_ref   : (1, Cout)
    # o_ref   : (1, TH, W, Cout)
    # pad_ref : (TH+2, W, Cin)    VMEM scratch: row-padded tile (no col pad)
    t = pl.program_id(1)
    last = pl.num_programs(1) - 1
    TH, W, Cin = x_ref.shape[1], x_ref.shape[2], x_ref.shape[3]
    Cout = o_ref.shape[3]
    P = TH + 2
    dt = pad_ref.dtype

    # ---- assemble the row-padded tile (leading-axis offsets only: aligned) --
    pad_ref[1:TH + 1] = x_ref[0]

    @pl.when(t == 0)
    def _():
        pad_ref[0:1] = jnp.zeros((1, W, Cin), dt)

    @pl.when(t > 0)
    def _():
        pad_ref[0:1] = xtop_ref[0]

    @pl.when(t == last)
    def _():
        pad_ref[P - 1:P] = jnp.zeros((1, W, Cin), dt)

    @pl.when(t < last)
    def _():
        pad_ref[P - 1:P] = xbot_ref[0]

    # ---- dx = +/-1 column shifts via XLU roll + one-column edge mask --------
    p3 = pad_ref[...]                                    # (P, W, Cin)
    p2 = p3.reshape(P * W, Cin)                          # tile-preserving merge
    # roll(+1): row k gets row k-1  -> column j holds input column j-1
    lcol = pltpu.roll(p2, 1, axis=0).reshape(P, W, Cin)
    # roll(-1) written as a non-negative shift: column j holds input column j+1
    rcol = pltpu.roll(p2, P * W - 1, axis=0).reshape(P, W, Cin)
    colid = jax.lax.broadcasted_iota(jnp.int32, (P, W, Cin), 1)
    zero = jnp.zeros_like(p3)
    lcol = jnp.where(colid == 0, zero, lcol)             # left image border
    rcol = jnp.where(colid == W - 1, zero, rcol)         # right image border
    cols = (lcol, p3, rcol)                              # dx = 0, 1, 2

    # ---- im2col: one (TH*W, 9*Cin) operand, ONE MXU matmul ------------------
    taps = [cols[dx][dy:dy + TH] for dy in range(3) for dx in range(3)]
    cat = jnp.concatenate(taps, axis=-1).reshape(TH * W, 9 * Cin)
    y = jnp.dot(cat, w_ref[...], preferred_element_type=jnp.float32)
    y = y + b_ref[...].astype(jnp.float32)
    o_ref[0] = y.reshape(TH, W, Cout).astype(o_ref.dtype)


# ---------------------------------------------------------------------------
# Row-tile policy: largest divisor of H whose per-step VMEM footprint fits a
# conservative budget (sized for v7x's 64 MiB/TC) while still leaving at least
# 2 grid steps overall (N*T >= 2), so both TensorCores get work and the DMA
# pipeline can overlap.  For N >= 2 and small images this picks TH = H.
# ---------------------------------------------------------------------------
def _pick_row_tile(N, H, W, Cin, Cout, itemsize):
    def vmem_bytes(th):
        body = 2 * th * W * Cin * itemsize               # double-buffered input
        halos = 2 * 2 * W * Cin * itemsize               # two 1-row halo streams
        wgt = 2 * 9 * Cin * Cout * itemsize
        out = 2 * th * W * Cout * itemsize               # double-buffered output
        pad = (th + 2) * W * Cin * itemsize              # row-padded scratch
        shifts = 2 * (th + 2) * W * Cin * itemsize       # rolled dx copies
        im2col = th * W * 9 * Cin * itemsize             # packed matmul operand
        acc = th * W * Cout * 4                          # f32 matmul result
        return body + halos + wgt + out + pad + shifts + im2col + acc

    budget = 40 * 1024 * 1024
    cands = sorted(th for th in range(1, H + 1) if H % th == 0)
    fit = [th for th in cands if vmem_bytes(th) <= budget] or [cands[0]]
    multi = [th for th in fit if N * (H // th) >= 2]
    # TODO(synk): for very large images whose H has awkward prime factors, a
    # pl.cdiv row grid with a masked last tile would tile better than divisors.
    return max(multi) if multi else max(fit)


# ---------------------------------------------------------------------------
# NHWC entry point (preferred: no boundary transposes).
#   x: (N, H, W, Cin);  w_hwio: (3, 3, Cin, Cout);  b: (Cout,)
# ---------------------------------------------------------------------------
def channel_upsample_residual_nhwc(x, w_hwio, b):
    N, H, W, Cin = x.shape
    Cout = w_hwio.shape[3]
    assert w_hwio.shape[:3] == (3, 3, Cin)
    assert Cout % Cin == 0, "out_channels must be a multiple of in_channels"
    repeats = Cout // Cin

    # Residual (repeat_interleave over channels == 1x1 conv with a 0/1 repeat
    # matrix) folded into the centre tap IN F32 (exact; avoids bf16 rounding of
    # the +1), then packed as (9*Cin, Cout) in (dy, dx, cin) order to match the
    # im2col operand of the single K = 9*Cin matmul.
    repeat_mat = jnp.repeat(jnp.eye(Cin, dtype=jnp.float32), repeats, axis=1)
    w_eff = w_hwio.astype(jnp.float32).at[1, 1].add(repeat_mat)
    w_packed = w_eff.reshape(9 * Cin, Cout).astype(w_hwio.dtype)

    itemsize = x.dtype.itemsize
    TH = _pick_row_tile(N, H, W, Cin, Cout, itemsize)
    T = H // TH

    cost = pl.CostEstimate(
        flops=2 * N * H * W * 9 * Cin * Cout,
        transcendentals=0,
        bytes_accessed=(N * H * W * (Cin + Cout)) * itemsize
        + 9 * Cin * Cout * itemsize + Cout * 4)

    return pl.pallas_call(
        _conv3x3_residual_kernel,
        out_shape=jax.ShapeDtypeStruct((N, H, W, Cout), x.dtype),
        grid=(N, T),
        in_specs=[
            # body rows of the tile
            pl.BlockSpec((1, TH, W, Cin), lambda n, t: (n, t, 0, 0)),
            # halo row above / below (1-row blocks: block index == row index),
            # clamped at the image border and replaced by zeros via pl.when
            pl.BlockSpec((1, 1, W, Cin),
                         lambda n, t: (n, jnp.maximum(t * TH - 1, 0), 0, 0)),
            pl.BlockSpec((1, 1, W, Cin),
                         lambda n, t: (n, jnp.minimum(t * TH + TH, H - 1), 0, 0)),
            # packed weights + bias: constant index -> resident across the grid
            pl.BlockSpec((9 * Cin, Cout), lambda n, t: (0, 0)),
            pl.BlockSpec((1, Cout), lambda n, t: (0, 0)),
        ],
        out_specs=pl.BlockSpec((1, TH, W, Cout), lambda n, t: (n, t, 0, 0)),
        scratch_shapes=[pltpu.VMEM((TH + 2, W, Cin), x.dtype)],
        compiler_params=pltpu.CompilerParams(
            dimension_semantics=("parallel", "parallel"),
            vmem_limit_bytes=48 * 1024 * 1024,   # headroom under v7x 64 MiB/TC
        ),
        cost_estimate=cost,
    )(x, x, x, w_packed, b.reshape(1, Cout))


# ---------------------------------------------------------------------------
# PyTorch-style NCHW wrapper.  (Production paths should stay NHWC end-to-end
# via channel_upsample_residual_nhwc and skip these two full-tensor passes.)
# ---------------------------------------------------------------------------
def channel_upsample_residual(x_nchw, w_hwio, b):
    x = jnp.transpose(x_nchw, (0, 2, 3, 1))              # NCHW -> NHWC
    y = channel_upsample_residual_nhwc(x, w_hwio, b)
    return jnp.transpose(y, (0, 3, 1, 2))                # NHWC -> NCHW


# ---------------------------------------------------------------------------
# Pure-JAX reference for a correctness sanity check.
# ---------------------------------------------------------------------------
def _ref_forward(x_nchw, w_hwio, b, repeats):
    y = jax.lax.conv_general_dilated(
        x_nchw, w_hwio, (1, 1), [(1, 1), (1, 1)],
        dimension_numbers=("NCHW", "HWIO", "NCHW"))
    y = y + b[None, :, None, None]
    return y + jnp.repeat(x_nchw, repeats, axis=1)       # repeat_interleave(dim=1)


if __name__ == "__main__":
    key = jax.random.PRNGKey(0)
    N, Cin, Cout, H, W = 2, 64, 128, 16, 16              # repeats = 2
    k0, k1, k2 = jax.random.split(key, 3)

    x = jax.random.normal(k0, (N, Cin, H, W), jnp.float32)
    # NOTE: a torch Conv2d weight (OIHW) maps to this HWIO via transpose(2,3,1,0).
    w = 0.05 * jax.random.normal(k1, (3, 3, Cin, Cout), jnp.float32)
    b = 0.05 * jax.random.normal(k2, (Cout,), jnp.float32)

    fwd = jax.jit(channel_upsample_residual)
    out = jax.block_until_ready(fwd(x, w, b))
    assert out.shape == (N, Cout, H, W)
    assert bool(jnp.all(jnp.isfinite(out)))

    ref = jax.block_until_ready(_ref_forward(x, w, b, Cout // Cin))
    max_err = float(jnp.max(jnp.abs(out - ref)))
    assert max_err < 1e-3, f"mismatch vs reference: {max_err}"

    print("KERNEL_OK")
</pallas_src>

<mosaic_0001>
module attributes {stable_mosaic.version = 11 : i64} {
  func.func @_conv3x3_residual_kernel(%arg0: i32, %arg1: i32, %arg2: memref<1x16x16x64xf32, #tpu.memory_space<vmem>>, %arg3: memref<1x1x16x64xf32, #tpu.memory_space<vmem>>, %arg4: memref<1x1x16x64xf32, #tpu.memory_space<vmem>>, %arg5: memref<576x128xf32, #tpu.memory_space<vmem>>, %arg6: memref<1x128xf32, #tpu.memory_space<vmem>>, %arg7: memref<1x16x16x128xf32, #tpu.memory_space<vmem>>, %arg8: memref<18x16x64xf32, #tpu.memory_space<vmem>>) attributes {dimension_semantics = [#tpu.dimension_semantics<parallel>, #tpu.dimension_semantics<parallel>], iteration_bounds = array<i64: 2, 1>, scalar_prefetch = 0 : i64, scratch_operands = 1 : i64, tpu.core_type = #tpu.core_type<tc>, window_params = [{transform_indices = @transform_0, window_bounds = array<i64: 1, 16, 16, 64>}, {transform_indices = @transform_1, window_bounds = array<i64: 1, 1, 16, 64>}, {transform_indices = @transform_2, window_bounds = array<i64: 1, 1, 16, 64>}, {pipeline_mode = #tpu.pipeline_mode<synchronous>, transform_indices = @transform_3, window_bounds = array<i64: 576, 128>}, {pipeline_mode = #tpu.pipeline_mode<synchronous>, transform_indices = @transform_4, window_bounds = array<i64: 1, 128>}, {transform_indices = @transform_5, window_bounds = array<i64: 1, 16, 16, 128>}]} {
    %c0 = arith.constant 0 : index
    %c0_0 = arith.constant 0 : index
    %c0_1 = arith.constant 0 : index
    %c0_2 = arith.constant 0 : index
    %0 = vector.load %arg2[%c0, %c0_0, %c0_1, %c0_2] : memref<1x16x16x64xf32, #tpu.memory_space<vmem>>, vector<1x16x16x64xf32>
    %1 = vector.shape_cast %0 : vector<1x16x16x64xf32> to vector<16x16x64xf32>
    %c1 = arith.constant 1 : index
    %c0_3 = arith.constant 0 : index
    %c0_4 = arith.constant 0 : index
    %2 = vector.load %arg8[%c1, %c0_3, %c0_4] : memref<18x16x64xf32, #tpu.memory_space<vmem>>, vector<16x16x64xf32>
    tpu.vector_store %arg8[%c1, %c0_3, %c0_4], %1 {strides = array<i32>} : memref<18x16x64xf32, #tpu.memory_space<vmem>>, vector<16x16x64xf32>,
    %c0_i32 = arith.constant 0 : i32
    %3 = arith.cmpi eq, %arg1, %c0_i32 : i32
    %4 = arith.extui %3 : i1 to i32
    %c0_i32_5 = arith.constant 0 : i32
    %5 = arith.cmpi ne, %4, %c0_i32_5 : i32
    scf.if %5 {
      %cst_25 = arith.constant 0.000000e+00 : f32
      %49 = vector.broadcast %cst_25 : f32 to vector<1x16x64xf32>
      %c0_26 = arith.constant 0 : index
      %c0_27 = arith.constant 0 : index
      %c0_28 = arith.constant 0 : index
      %50 = vector.load %arg8[%c0_26, %c0_27, %c0_28] : memref<18x16x64xf32, #tpu.memory_space<vmem>>, vector<1x16x64xf32>
      tpu.vector_store %arg8[%c0_26, %c0_27, %c0_28], %49 {strides = array<i32>} : memref<18x16x64xf32, #tpu.memory_space<vmem>>, vector<1x16x64xf32>,
    } else {
    }
    %c0_i32_6 = arith.constant 0 : i32
    %6 = arith.cmpi sgt, %arg1, %c0_i32_6 : i32
    %7 = arith.extui %6 : i1 to i32
    %c0_i32_7 = arith.constant 0 : i32
    %8 = arith.cmpi ne, %7, %c0_i32_7 : i32
    scf.if %8 {
      %c0_25 = arith.constant 0 : index
      %c0_26 = arith.constant 0 : index
      %c0_27 = arith.constant 0 : index
      %c0_28 = arith.constant 0 : index
      %49 = vector.load %arg3[%c0_25, %c0_26, %c0_27, %c0_28] : memref<1x1x16x64xf32, #tpu.memory_space<vmem>>, vector<1x1x16x64xf32>
      %50 = vector.shape_cast %49 : vector<1x1x16x64xf32> to vector<1x16x64xf32>
      %c0_29 = arith.constant 0 : index
      %c0_30 = arith.constant 0 : index
      %c0_31 = arith.constant 0 : index
      %51 = vector.load %arg8[%c0_29, %c0_30, %c0_31] : memref<18x16x64xf32, #tpu.memory_space<vmem>>, vector<1x16x64xf32>
      tpu.vector_store %arg8[%c0_29, %c0_30, %c0_31], %50 {strides = array<i32>} : memref<18x16x64xf32, #tpu.memory_space<vmem>>, vector<1x16x64xf32>,
    } else {
    }
    %c0_i32_8 = arith.constant 0 : i32
    %9 = arith.cmpi eq, %arg1, %c0_i32_8 : i32
    %10 = arith.extui %9 : i1 to i32
    %c0_i32_9 = arith.constant 0 : i32
    %11 = arith.cmpi ne, %10, %c0_i32_9 : i32
    scf.if %11 {
      %cst_25 = arith.constant 0.000000e+00 : f32
      %49 = vector.broadcast %cst_25 : f32 to vector<1x16x64xf32>
      %c17 = arith.constant 17 : index
      %c0_26 = arith.constant 0 : index
      %c0_27 = arith.constant 0 : index
      %50 = vector.load %arg8[%c17, %c0_26, %c0_27] : memref<18x16x64xf32, #tpu.memory_space<vmem>>, vector<1x16x64xf32>
      tpu.vector_store %arg8[%c17, %c0_26, %c0_27], %49 {strides = array<i32>} : memref<18x16x64xf32, #tpu.memory_space<vmem>>, vector<1x16x64xf32>,
    } else {
    }
    %c0_i32_10 = arith.constant 0 : i32
    %12 = arith.cmpi slt, %arg1, %c0_i32_10 : i32
    %13 = arith.extui %12 : i1 to i32
    %c0_i32_11 = arith.constant 0 : i32
    %14 = arith.cmpi ne, %13, %c0_i32_11 : i32
    scf.if %14 {
      %c0_25 = arith.constant 0 : index
      %c0_26 = arith.constant 0 : index
      %c0_27 = arith.constant 0 : index
      %c0_28 = arith.constant 0 : index
      %49 = vector.load %arg4[%c0_25, %c0_26, %c0_27, %c0_28] : memref<1x1x16x64xf32, #tpu.memory_space<vmem>>, vector<1x1x16x64xf32>
      %50 = vector.shape_cast %49 : vector<1x1x16x64xf32> to vector<1x16x64xf32>
      %c17 = arith.constant 17 : index
      %c0_29 = arith.constant 0 : index
      %c0_30 = arith.constant 0 : index
      %51 = vector.load %arg8[%c17, %c0_29, %c0_30] : memref<18x16x64xf32, #tpu.memory_space<vmem>>, vector<1x16x64xf32>
      tpu.vector_store %arg8[%c17, %c0_29, %c0_30], %50 {strides = array<i32>} : memref<18x16x64xf32, #tpu.memory_space<vmem>>, vector<1x16x64xf32>,
    } else {
    }
    %c0_12 = arith.constant 0 : index
    %c0_13 = arith.constant 0 : index
    %c0_14 = arith.constant 0 : index
    %15 = vector.load %arg8[%c0_12, %c0_13, %c0_14] : memref<18x16x64xf32, #tpu.memory_space<vmem>>, vector<18x16x64xf32>
    %16 = vector.shape_cast %15 : vector<18x16x64xf32> to vector<288x64xf32>
    %c1_i32 = arith.constant 1 : i32
    %17 = tpu.dynamic_rotate %16 by %c1_i32 dim 0 : vector<288x64xf32>, i32 -> vector<288x64xf32>
    %18 = vector.shape_cast %17 : vector<288x64xf32> to vector<18x16x64xf32>
    %c287_i32 = arith.constant 287 : i32
    %19 = tpu.dynamic_rotate %16 by %c287_i32 dim 0 : vector<288x64xf32>, i32 -> vector<288x64xf32>
    %20 = vector.shape_cast %19 : vector<288x64xf32> to vector<18x16x64xf32>
    %21 = tpu.iota {dimensions = array<i32: 1>} : vector<18x16x64xi32>
    %cst = arith.constant 0.000000e+00 : f32
    %22 = vector.broadcast %cst : f32 to vector<18x16x64xf32>
    %c0_i32_15 = arith.constant 0 : i32
    %23 = vector.broadcast %c0_i32_15 : i32 to vector<18x16x64xi32>
    %24 = arith.cmpi eq, %21, %23 : vector<18x16x64xi32>
    %25 = arith.select %24, %22, %18 : vector<18x16x64xi1>, vector<18x16x64xf32>
    %c15_i32 = arith.constant 15 : i32
    %26 = vector.broadcast %c15_i32 : i32 to vector<18x16x64xi32>
    %27 = arith.cmpi eq, %21, %26 : vector<18x16x64xi32>
    %28 = arith.select %27, %22, %20 : vector<18x16x64xi1>, vector<18x16x64xf32>
    %29 = vector.extract_strided_slice %25 {offsets = [0, 0, 0], sizes = [16, 16, 64], strides = [1, 1, 1]} : vector<18x16x64xf32> to vector<16x16x64xf32>
    %30 = vector.extract_strided_slice %15 {offsets = [0, 0, 0], sizes = [16, 16, 64], strides = [1, 1, 1]} : vector<18x16x64xf32> to vector<16x16x64xf32>
    %31 = vector.extract_strided_slice %28 {offsets = [0, 0, 0], sizes = [16, 16, 64], strides = [1, 1, 1]} : vector<18x16x64xf32> to vector<16x16x64xf32>
    %32 = vector.extract_strided_slice %25 {offsets = [1, 0, 0], sizes = [16, 16, 64], strides = [1, 1, 1]} : vector<18x16x64xf32> to vector<16x16x64xf32>
    %33 = vector.extract_strided_slice %15 {offsets = [1, 0, 0], sizes = [16, 16, 64], strides = [1, 1, 1]} : vector<18x16x64xf32> to vector<16x16x64xf32>
    %34 = vector.extract_strided_slice %28 {offsets = [1, 0, 0], sizes = [16, 16, 64], strides = [1, 1, 1]} : vector<18x16x64xf32> to vector<16x16x64xf32>
    %35 = vector.extract_strided_slice %25 {offsets = [2, 0, 0], sizes = [16, 16, 64], strides = [1, 1, 1]} : vector<18x16x64xf32> to vector<16x16x64xf32>
    %36 = vector.extract_strided_slice %15 {offsets = [2, 0, 0], sizes = [16, 16, 64], strides = [1, 1, 1]} : vector<18x16x64xf32> to vector<16x16x64xf32>
    %37 = vector.extract_strided_slice %28 {offsets = [2, 0, 0], sizes = [16, 16, 64], strides = [1, 1, 1]} : vector<18x16x64xf32> to vector<16x16x64xf32>
    %38 = tpu.concatenate %29, %30, %31, %32, %33, %34, %35, %36, %37 in 2 : vector<16x16x64xf32>, vector<16x16x64xf32>, vector<16x16x64xf32>, vector<16x16x64xf32>, vector<16x16x64xf32>, vector<16x16x64xf32>, vector<16x16x64xf32>, vector<16x16x64xf32>, vector<16x16x64xf32> -> vector<16x16x576xf32>
    %39 = vector.shape_cast %38 : vector<16x16x576xf32> to vector<256x576xf32>
    %c0_16 = arith.constant 0 : index
    %c0_17 = arith.constant 0 : index
    %40 = vector.load %arg5[%c0_16, %c0_17] : memref<576x128xf32, #tpu.memory_space<vmem>>, vector<576x128xf32>
    %cst_18 = arith.constant dense<0.000000e+00> : vector<256x128xf32>
    %41 = tpu.matmul %39, %40, %cst_18 {dimension_numbers = #tpu.dot_dimension_numbers<[1], [0], [0], [1], [0, 0, 1, 1], [], []>} : vector<256x576xf32>, vector<576x128xf32>, vector<256x128xf32> -> vector<256x128xf32>
    %c0_19 = arith.constant 0 : index
    %c0_20 = arith.constant 0 : index
    %42 = vector.load %arg6[%c0_19, %c0_20] : memref<1x128xf32, #tpu.memory_space<vmem>>, vector<1x128xf32>
    %43 = vector.broadcast %42 : vector<1x128xf32> to vector<256x128xf32>
    %44 = arith.addf %41, %43 : vector<256x128xf32>
    %45 = vector.shape_cast %44 : vector<256x128xf32> to vector<16x16x128xf32>
    %c0_21 = arith.constant 0 : index
    %c0_22 = arith.constant 0 : index
    %c0_23 = arith.constant 0 : index
    %c0_24 = arith.constant 0 : index
    %46 = vector.load %arg7[%c0_21, %c0_22, %c0_23, %c0_24] : memref<1x16x16x128xf32, #tpu.memory_space<vmem>>, vector<1x16x16x128xf32>
    %47 = vector.shape_cast %46 : vector<1x16x16x128xf32> to vector<16x16x128xf32>
    %48 = vector.shape_cast %45 : vector<16x16x128xf32> to vector<1x16x16x128xf32>
    tpu.vector_store %arg7[%c0_21, %c0_22, %c0_23, %c0_24], %48 {strides = array<i32>} : memref<1x16x16x128xf32, #tpu.memory_space<vmem>>, vector<1x16x16x128xf32>,
    return
  }
  func.func @transform_0(%arg0: i32, %arg1: i32) -> (i32, i32, i32, i32) {
    %c0_i32 = arith.constant 0 : i32
    %c0_i32_0 = arith.constant 0 : i32
    %c0_i32_1 = arith.constant 0 : i32
    return %arg0, %arg1, %c0_i32, %c0_i32_0 : i32, i32, i32, i32
  }
  func.func @transform_1(%arg0: i32, %arg1: i32) -> (i32, i32, i32, i32) {
    %c16_i32 = arith.constant 16 : i32
    %0 = arith.muli %arg1, %c16_i32 : i32
    %c1_i32 = arith.constant 1 : i32
    %1 = arith.subi %0, %c1_i32 : i32
    %c0_i32 = arith.constant 0 : i32
    %2 = arith.maxsi %1, %c0_i32 : i32
    %c0_i32_0 = arith.constant 0 : i32
    %c0_i32_1 = arith.constant 0 : i32
    %c0_i32_2 = arith.constant 0 : i32
    return %arg0, %2, %c0_i32_0, %c0_i32_1 : i32, i32, i32, i32
  }
  func.func @transform_2(%arg0: i32, %arg1: i32) -> (i32, i32, i32, i32) {
    %c16_i32 = arith.constant 16 : i32
    %0 = arith.muli %arg1, %c16_i32 : i32
    %c16_i32_0 = arith.constant 16 : i32
    %1 = arith.addi %0, %c16_i32_0 : i32
    %c15_i32 = arith.constant 15 : i32
    %2 = arith.minsi %1, %c15_i32 : i32
    %c0_i32 = arith.constant 0 : i32
    %c0_i32_1 = arith.constant 0 : i32
    %c0_i32_2 = arith.constant 0 : i32
    return %arg0, %2, %c0_i32, %c0_i32_1 : i32, i32, i32, i32
  }
  func.func @transform_3(%arg0: i32, %arg1: i32) -> (i32, i32) {
    %c0_i32 = arith.constant 0 : i32
    %c0_i32_0 = arith.constant 0 : i32
    %c0_i32_1 = arith.constant 0 : i32
    return %c0_i32, %c0_i32_0 : i32, i32
  }
  func.func @transform_4(%arg0: i32, %arg1: i32) -> (i32, i32) {
    %c0_i32 = arith.constant 0 : i32
    %c0_i32_0 = arith.constant 0 : i32
    %c0_i32_1 = arith.constant 0 : i32
    return %c0_i32, %c0_i32_0 : i32, i32
  }
  func.func @transform_5(%arg0: i32, %arg1: i32) -> (i32, i32, i32, i32) {
    %c0_i32 = arith.constant 0 : i32
    %c0_i32_0 = arith.constant 0 : i32
    %c0_i32_1 = arith.constant 0 : i32
    return %arg0, %arg1, %c0_i32, %c0_i32_0 : i32, i32, i32, i32
  }
}

</mosaic_0001>

<llo_original>
// kernel: channel_upsample_residual.1
$region0: #{channel_upsample_residual.1}
  #allocation0 [shape = 'u32[]', space=smem, size = 0x4, offset = 0x4, fixed_abs, tag = 'smem constant byte address 0x4 - core index']
  #allocation1 [shape = 'u32[144,128]{1,0:T(1,128)}', space=vmem, size = 0x12000, scoped, tag = 'internal scratch']
  #allocation2 [shape = 'f32[18,16,64]{2,1,0:T(8,128)}', space=vmem, size = 0x24000, scoped, tag = 'scratch operand']
  %s0 = inlined_call_operand.vmem [shape: f32[2,16,16,64], index: 0, kind: input, shape index: {}, may-alias: {0,1,2}]
  %s1 = inlined_call_operand.vmem [shape: f32[2,16,16,64], index: 1, kind: input, shape index: {}, may-alias: {0,1,2}]
  %s2 = inlined_call_operand.vmem [shape: f32[2,16,16,64], index: 2, kind: input, shape index: {}, may-alias: {0,1,2}]
  %s3 = inlined_call_operand.vmem [shape: f32[576,128], index: 3, kind: input, shape index: {}]
  %s4 = inlined_call_operand.vmem [shape: f32[1,128], index: 4, kind: input, shape index: {}]
  %s5 = inlined_call_operand.hbm [shape: f32[2,16,16,128], index: 5, kind: output, shape index: {}]
  %s6 = sld [smem:[#allocation0]]
  $region69: #{channel_upsample_residual.1} parent=0
    _
  %s8 = ssub.s32 1, %s6
  %s9 = scalar_select 0, %s8, %s6
  $region1: #{channel_upsample_residual.1} parent=0
    #allocation3 [shape = 'u8[262144]{0}', space=vmem, size = 0x40000, scoped, tag = 'output window, operand 0']
    #allocation4 [shape = 's32[2]{0}', space=sflag, size = 0x8, scoped, tag = 'scoped memory for channel_upsample_residual.1']
    %10 = vsyncpa [#allocation4], 0
    %s11 = scalar_lea.sflag [#allocation4], 1
    %12 = vsyncpa %s11, 0
    loop: start=0, step=1, limit=4
    $region2: #{channel_upsample_residual.1} parent=1 // loop_pre_header
      _
    $region3: #{channel_upsample_residual.1} parent=1 // loop_header
      %s14 = sphi 0, %s18
      %p15 = scmp.ge.s32.totalorder %s14, 4
      %s21 = sphi 0, %s33
      %s22 = sphi 0, %s29
      %s23 = sphi 0, %s21
      %s24 = sphi 0, %s22
      %s25 = sphi 0, %s23
      %s26 = sphi 0, %s24
      %s38 = sphi 0, %s40
      %s41 = sphi 0, %s38
      %s42 = sphi 0, %s41
      %s58 = sphi 0, %s42
      %s74 = sphi 0, %s76
      %s77 = sphi 0, %s74
      %s78 = sphi 0, %s77
      %s94 = sphi 0, %s78
      %s110 = sphi 0, %s112
      %s113 = sphi 0, %s110
      %s114 = sphi 0, %s113
      %s130 = sphi 0, %s114
      %s134 = sphi 0, %s134
      %s136 = sphi 0, %s134
      %s137 = sphi 0, %s136
      %s151 = sphi 0, %s137
      %s155 = sphi 0, %s155
      %s157 = sphi 0, %s155
      %s158 = sphi 0, %s157
      %s172 = sphi 0, %s158
      %s180 = sphi 0, %s182
      %s183 = sphi 0, %s180
      %s184 = sphi 0, %s183
      %s200 = sphi 0, %s184
    $region4: #{channel_upsample_residual.1} parent=1 // loop_header_branch
      %17 = sbr.rel (%p15) target = $region8
    $region5: #{channel_upsample_residual.1} parent=1 // loop_body
      %s19 = ssub.s32 %s14, 1
      %s20 = ssub.s32 %s14, 2
      %s27 = sadd.s32 1, %s22
      %p28 = scmp.ge.s32.totalorder %s27, 1
      %s29 = scalar_select %p28, 0, %s27
      %s30 = sadd.s32 1, %s21
      %s31 = scalar_select %p28, %s30, %s21
      %p32 = scmp.ge.s32.totalorder %s31, 2
      %s33 = scalar_select %p32, 0, %s31
      %s34 = ssub.s32 %s21, %s33
      %s35 = ssub.s32 %s22, %s29
      %s36 = sor.u32 %s34, %s35
      %p37 = scmp.eq.s32.totalorder %s36, 0
      %s39 = sadd.s32 %s38, 1
      %s40 = scalar_select %p37, %s38, %s39
      %p43 = pneg %p37
      %p44 = scmp.eq.s32.totalorder %s14, 1
      %p45 = por %p43, %p44
      %p46 = scmp.ne.s32.totalorder %s38, %s41
      %p47 = scmp.eq.s32.totalorder %s14, 0
      %p48 = por %p46, %p47
      %p49 = scmp.ne.s32.totalorder %s38, %s41
      %p50 = scmp.eq.s32.totalorder %s19, 1
      %p51 = por %p49, %p50
      %p52 = scmp.ne.s32.totalorder %s41, %s42
      %p53 = scmp.eq.s32.totalorder %s19, 0
      %p54 = por %p52, %p53
      %p55 = scmp.ne.s32.totalorder %s41, %s42
      %p56 = scmp.eq.s32.totalorder %s20, 1
      %p57 = por %p55, %p56
      %p59 = scmp.ne.s32.totalorder %s42, %s58
      %p60 = scmp.eq.s32.totalorder %s20, 0
      %p61 = por %p59, %p60
      %s62 = smul.u32 %s22, 16
      %s63 = ssub.s32 %s62, 1
      %p64 = scmp.gt.s32.totalorder %s63, 0
      %s65 = scalar_select %p64, %s63, 0
      %s66 = smul.u32 %s29, 16
      %s67 = ssub.s32 %s66, 1
      %p68 = scmp.gt.s32.totalorder %s67, 0
      %s69 = scalar_select %p68, %s67, 0
      %s70 = ssub.s32 %s21, %s33
      %s71 = ssub.s32 %s65, %s69
      %s72 = sor.u32 %s70, %s71
      %p73 = scmp.eq.s32.totalorder %s72, 0
      %s75 = sadd.s32 %s74, 1
      %s76 = scalar_select %p73, %s74, %s75
      %p79 = pneg %p73
      %p80 = scmp.eq.s32.totalorder %s14, 1
      %p81 = por %p79, %p80
      %p82 = scmp.ne.s32.totalorder %s74, %s77
      %p83 = scmp.eq.s32.totalorder %s14, 0
      %p84 = por %p82, %p83
      %p85 = scmp.ne.s32.totalorder %s74, %s77
      %p86 = scmp.eq.s32.totalorder %s19, 1
      %p87 = por %p85, %p86
      %p88 = scmp.ne.s32.totalorder %s77, %s78
      %p89 = scmp.eq.s32.totalorder %s19, 0
      %p90 = por %p88, %p89
      %p91 = scmp.ne.s32.totalorder %s77, %s78
      %p92 = scmp.eq.s32.totalorder %s20, 1
      %p93 = por %p91, %p92
      %p95 = scmp.ne.s32.totalorder %s78, %s94
      %p96 = scmp.eq.s32.totalorder %s20, 0
      %p97 = por %p95, %p96
      %s98 = smul.u32 %s22, 16
      %s99 = sadd.s32 %s98, 16
      %p100 = scmp.lt.s32.totalorder %s99, 15
      %s101 = scalar_select %p100, %s99, 15
      %s102 = smul.u32 %s29, 16
      %s103 = sadd.s32 %s102, 16
      %p104 = scmp.lt.s32.totalorder %s103, 15
      %s105 = scalar_select %p104, %s103, 15
      %s106 = ssub.s32 %s21, %s33
      %s107 = ssub.s32 %s101, %s105
      %s108 = sor.u32 %s106, %s107
      %p109 = scmp.eq.s32.totalorder %s108, 0
      %s111 = sadd.s32 %s110, 1
      %s112 = scalar_select %p109, %s110, %s111
      %p115 = pneg %p109
      %p116 = scmp.eq.s32.totalorder %s14, 1
      %p117 = por %p115, %p116
      %p118 = scmp.ne.s32.totalorder %s110, %s113
      %p119 = scmp.eq.s32.totalorder %s14, 0
      %p120 = por %p118, %p119
      %p121 = scmp.ne.s32.totalorder %s110, %s113
      %p122 = scmp.eq.s32.totalorder %s19, 1
      %p123 = por %p121, %p122
      %p124 = scmp.ne.s32.totalorder %s113, %s114
      %p125 = scmp.eq.s32.totalorder %s19, 0
      %p126 = por %p124, %p125
      %p127 = scmp.ne.s32.totalorder %s113, %s114
      %p128 = scmp.eq.s32.totalorder %s20, 1
      %p129 = por %p127, %p128
      %p131 = scmp.ne.s32.totalorder %s114, %s130
      %p132 = scmp.eq.s32.totalorder %s20, 0
      %p133 = por %p131, %p132
      %s135 = sadd.s32 %s134, 1
      %p138 = scmp.eq.s32.totalorder %s14, 1
      %p139 = scmp.ne.s32.totalorder %s134, %s136
      %p140 = scmp.eq.s32.totalorder %s14, 0
      %p141 = por %p139, %p140
      %p142 = scmp.ne.s32.totalorder %s134, %s136
      %p143 = scmp.eq.s32.totalorder %s19, 1
      %p144 = por %p142, %p143
      %p145 = scmp.ne.s32.totalorder %s136, %s137
      %p146 = scmp.eq.s32.totalorder %s19, 0
      %p147 = por %p145, %p146
      %p148 = scmp.ne.s32.totalorder %s136, %s137
      %p149 = scmp.eq.s32.totalorder %s20, 1
      %p150 = por %p148, %p149
      %p152 = scmp.ne.s32.totalorder %s137, %s151
      %p153 = scmp.eq.s32.totalorder %s20, 0
      %p154 = por %p152, %p153
      %s156 = sadd.s32 %s155, 1
      %p159 = scmp.eq.s32.totalorder %s14, 1
      %p160 = scmp.ne.s32.totalorder %s155, %s157
      %p161 = scmp.eq.s32.totalorder %s14, 0
      %p162 = por %p160, %p161
      %p163 = scmp.ne.s32.totalorder %s155, %s157
      %p164 = scmp.eq.s32.totalorder %s19, 1
      %p165 = por %p163, %p164
      %p166 = scmp.ne.s32.totalorder %s157, %s158
      %p167 = scmp.eq.s32.totalorder %s19, 0
      %p168 = por %p166, %p167
      %p169 = scmp.ne.s32.totalorder %s157, %s158
      %p170 = scmp.eq.s32.totalorder %s20, 1
      %p171 = por %p169, %p170
      %p173 = scmp.ne.s32.totalorder %s158, %s172
      %p174 = scmp.eq.s32.totalorder %s20, 0
      %p175 = por %p173, %p174
      %s176 = ssub.s32 %s21, %s33
      %s177 = ssub.s32 %s22, %s29
      %s178 = sor.u32 %s176, %s177
      %p179 = scmp.eq.s32.totalorder %s178, 0
      %s181 = sadd.s32 %s180, 1
      %s182 = scalar_select %p179, %s180, %s181
      %p185 = pneg %p179
      %p186 = scmp.eq.s32.totalorder %s14, 1
      %p187 = por %p185, %p186
      %p188 = scmp.ne.s32.totalorder %s180, %s183
      %p189 = scmp.eq.s32.totalorder %s14, 0
      %p190 = por %p188, %p189
      %p191 = scmp.ne.s32.totalorder %s180, %s183
      %p192 = scmp.eq.s32.totalorder %s19, 1
      %p193 = por %p191, %p192
      %p194 = scmp.ne.s32.totalorder %s183, %s184
      %p195 = scmp.eq.s32.totalorder %s19, 0
      %p196 = por %p194, %p195
      %p197 = scmp.ne.s32.totalorder %s183, %s184
      %p198 = scmp.eq.s32.totalorder %s20, 1
      %p199 = por %p197, %p198
      %p201 = scmp.ne.s32.totalorder %s184, %s200
      %p202 = scmp.eq.s32.totalorder %s20, 0
      %p203 = por %p201, %p202
      %p204 = scmp.le.s32.totalorder 1, %s14
      %p205 = scmp.lt.s32.totalorder %s14, 3
      %p206 = pnand %p204, %p205
      %p207 = pneg %p206
      // Predicated region
      $region9: #{channel_upsample_residual.1} parent=5 // pred_check
        _
      $region10: #{channel_upsample_residual.1} parent=5 // pred_check_branch
        %209 = sbr.rel (%p206) target = $region12
      $region11: #{channel_upsample_residual.1} parent=5 // pred_region
        %s210 = ssub.s32 %s14, 1
        // Predicated region
        $region13: #{channel_upsample_residual.1} parent=11 // pred_check
          %p211 = pneg %p147
        $region14: #{channel_upsample_residual.1} parent=11 // pred_check_branch
          %213 = sbr.rel (%p211) target = $region16
        $region15: #{channel_upsample_residual.1} parent=11 // pred_region
          _
        $region16: #{channel_upsample_residual.1} parent=11 // pred_fallthru
          _
        // Predicated region
        $region17: #{channel_upsample_residual.1} parent=11 // pred_check
          %p214 = pneg %p168
        $region18: #{channel_upsample_residual.1} parent=11 // pred_check_branch
          %216 = sbr.rel (%p214) target = $region20
        $region19: #{channel_upsample_residual.1} parent=11 // pred_region
          _
        $region20: #{channel_upsample_residual.1} parent=11 // pred_fallthru
          _
      $region12: #{channel_upsample_residual.1} parent=5 // pred_fallthru
        _
      %p217 = scmp.lt.s32.totalorder %s14, 2
      // Predicated region
      $region21: #{channel_upsample_residual.1} parent=5 // pred_check
        %p218 = pneg %p217
      $region22: #{channel_upsample_residual.1} parent=5 // pred_check_branch
        %220 = sbr.rel (%p218) target = $region24
      $region23: #{channel_upsample_residual.1} parent=5 // pred_region
        // Predicated region
        $region25: #{channel_upsample_residual.1} parent=23 // pred_check
          %p221 = pneg %p48
        $region26: #{channel_upsample_residual.1} parent=23 // pred_check_branch
          %223 = sbr.rel (%p221) target = $region28
        $region27: #{channel_upsample_residual.1} parent=23 // pred_region
          %s224 = smul.u32 16, %s22
          %p225 = scmp.lt.s32.totalorder %s21, 1
          %s226 = scalar_select %p225, %s21, 1
          %p227 = scmp.lt.s32.totalorder %s224, 15
          %s228 = scalar_select %p227, %s224, 15
          %s229 = smul.addr %s228, 2
          %s230 = smul.addr %s226, 32
          %s231 = sadd.s32 %s229, %s230
          %s232 = smul.addr %s231, 8
          %s233 = scalar_lea.vmem %s0, %s232
          %s234 = smul.u32 16, %s22
        $region28: #{channel_upsample_residual.1} parent=23 // pred_fallthru
          _
        // Predicated region
        $region29: #{channel_upsample_residual.1} parent=23 // pred_check
          %p235 = pneg %p84
        $region30: #{channel_upsample_residual.1} parent=23 // pred_check_branch
          %237 = sbr.rel (%p235) target = $region32
        $region31: #{channel_upsample_residual.1} parent=23 // pred_region
          %s238 = smul.u32 %s22, 16
          %s239 = ssub.s32 %s238, 1
          %p240 = scmp.gt.s32.totalorder %s239, 0
          %s241 = scalar_select %p240, %s239, 0
          %p242 = scmp.lt.s32.totalorder %s21, 1
          %s243 = scalar_select %p242, %s21, 1
          %p244 = scmp.lt.s32.totalorder %s241, 15
          %s245 = scalar_select %p244, %s241, 15
          %s246 = smul.addr %s245, 2
          %s247 = smul.addr %s243, 32
          %s248 = sadd.s32 %s246, %s247
          %s249 = smul.addr %s248, 8
          %s250 = scalar_lea.vmem %s1, %s249
          %s251 = smul.u32 %s22, 16
          %s252 = ssub.s32 %s251, 1
          %p253 = scmp.gt.s32.totalorder %s252, 0
          %s254 = scalar_select %p253, %s252, 0
        $region32: #{channel_upsample_residual.1} parent=23 // pred_fallthru
          _
        // Predicated region
        $region33: #{channel_upsample_residual.1} parent=23 // pred_check
          %p255 = pneg %p120
        $region34: #{channel_upsample_residual.1} parent=23 // pred_check_branch
          %257 = sbr.rel (%p255) target = $region36
        $region35: #{channel_upsample_residual.1} parent=23 // pred_region
          %s258 = smul.u32 %s22, 16
          %s259 = sadd.s32 %s258, 16
          %p260 = scmp.lt.s32.totalorder %s259, 15
          %s261 = scalar_select %p260, %s259, 15
          %p262 = scmp.lt.s32.totalorder %s21, 1
          %s263 = scalar_select %p262, %s21, 1
          %p264 = scmp.lt.s32.totalorder %s261, 15
          %s265 = scalar_select %p264, %s261, 15
          %s266 = smul.addr %s265, 2
          %s267 = smul.addr %s263, 32
          %s268 = sadd.s32 %s266, %s267
          %s269 = smul.addr %s268, 8
          %s270 = scalar_lea.vmem %s2, %s269
          %s271 = smul.u32 %s22, 16
          %s272 = sadd.s32 %s271, 16
          %p273 = scmp.lt.s32.totalorder %s272, 15
          %s274 = scalar_select %p273, %s272, 15
        $region36: #{channel_upsample_residual.1} parent=23 // pred_fallthru
          _
      $region24: #{channel_upsample_residual.1} parent=5 // pred_fallthru
        _
      %p275 = scmp.le.s32.totalorder 1, %s14
      %p276 = scmp.lt.s32.totalorder %s14, 3
      %p277 = pnand %p275, %p276
      %p278 = pneg %p277
      // Predicated region
      $region37: #{channel_upsample_residual.1} parent=5 // pred_check
        _
      $region38: #{channel_upsample_residual.1} parent=5 // pred_check_branch
        %280 = sbr.rel (%p277) target = $region40
      $region39: #{channel_upsample_residual.1} parent=5 // pred_region
        %s281 = ssub.s32 %s14, 1
        %s282 = smul.u32 16, %s24
        %p283 = scmp.lt.s32.totalorder %s23, 1
        %s284 = scalar_select %p283, %s23, 1
        %p285 = scmp.lt.s32.totalorder %s282, 15
        %s286 = scalar_select %p285, %s282, 15
        %s287 = smul.addr %s286, 2
        %s288 = smul.addr %s284, 32
        %s289 = sadd.s32 %s287, %s288
        %s290 = smul.addr %s289, 8
        %s291 = scalar_lea.vmem %s0, %s290
        %p292 = pneg %p54
        %p293 = pneg %p51
        %s294 = smul.u32 %s24, 16
        %s295 = ssub.s32 %s294, 1
        %p296 = scmp.gt.s32.totalorder %s295, 0
        %s297 = scalar_select %p296, %s295, 0
        %p298 = scmp.lt.s32.totalorder %s23, 1
        %s299 = scalar_select %p298, %s23, 1
        %p300 = scmp.lt.s32.totalorder %s297, 15
        %s301 = scalar_select %p300, %s297, 15
        %s302 = smul.addr %s301, 2
        %s303 = smul.addr %s299, 32
        %s304 = sadd.s32 %s302, %s303
        %s305 = smul.addr %s304, 8
        %s306 = scalar_lea.vmem %s1, %s305
        %p307 = pneg %p90
        %p308 = pneg %p87
        %s309 = smul.u32 %s24, 16
        %s310 = sadd.s32 %s309, 16
        %p311 = scmp.lt.s32.totalorder %s310, 15
        %s312 = scalar_select %p311, %s310, 15
        %p313 = scmp.lt.s32.totalorder %s23, 1
        %s314 = scalar_select %p313, %s23, 1
        %p315 = scmp.lt.s32.totalorder %s312, 15
        %s316 = scalar_select %p315, %s312, 15
        %s317 = smul.addr %s316, 2
        %s318 = smul.addr %s314, 32
        %s319 = sadd.s32 %s317, %s318
        %s320 = smul.addr %s319, 8
        %s321 = scalar_lea.vmem %s2, %s320
        %p322 = pneg %p126
        %p323 = pneg %p123
        %p324 = pneg %p147
        %p325 = pneg %p144
        %p326 = pneg %p168
        %p327 = pneg %p165
        %p328 = pneg %p196
        %p329 = pneg %p193
        %s330 = sand.u32 %s183, 1
        %s331 = scalar_lea.sflag [#allocation4], %s330
        %s332 = sand.u32 %s183, 1
        %s333 = smul.addr %s332, 256
        %s334 = scalar_lea.vmem [#allocation3], %s333
        %s335 = smul.u32 16, %s24
        %p336 = scmp.lt.s32.totalorder %s23, 1
        %s337 = scalar_select %p336, %s23, 1
        %p338 = scmp.lt.s32.totalorder %s335, 15
        %s339 = scalar_select %p338, %s335, 15
        %s340 = smul.addr %s339, 2
        %s341 = smul.addr %s337, 32
        %s342 = sadd.s32 %s340, %s341
        %s343 = smul.addr %s342, 8
        %s344 = scalar_lea.vmem %s0, %s343
        %s345 = smul.u32 16, %s24
        %s346 = smul.u32 %s24, 16
        %s347 = ssub.s32 %s346, 1
        %p348 = scmp.gt.s32.totalorder %s347, 0
        %s349 = scalar_select %p348, %s347, 0
        %p350 = scmp.lt.s32.totalorder %s23, 1
        %s351 = scalar_select %p350, %s23, 1
        %p352 = scmp.lt.s32.totalorder %s349, 15
        %s353 = scalar_select %p352, %s349, 15
        %s354 = smul.addr %s353, 2
        %s355 = smul.addr %s351, 32
        %s356 = sadd.s32 %s354, %s355
        %s357 = smul.addr %s356, 8
        %s358 = scalar_lea.vmem %s1, %s357
        %s359 = smul.u32 %s24, 16
        %s360 = ssub.s32 %s359, 1
        %p361 = scmp.gt.s32.totalorder %s360, 0
        %s362 = scalar_select %p361, %s360, 0
        %s363 = smul.u32 %s24, 16
        %s364 = sadd.s32 %s363, 16
        %p365 = scmp.lt.s32.totalorder %s364, 15
        %s366 = scalar_select %p365, %s364, 15
        %p367 = scmp.lt.s32.totalorder %s23, 1
        %s368 = scalar_select %p367, %s23, 1
        %p369 = scmp.lt.s32.totalorder %s366, 15
        %s370 = scalar_select %p369, %s366, 15
        %s371 = smul.addr %s370, 2
        %s372 = smul.addr %s368, 32
        %s373 = sadd.s32 %s371, %s372
        %s374 = smul.addr %s373, 8
        %s375 = scalar_lea.vmem %s2, %s374
        %s376 = smul.u32 %s24, 16
        %s377 = sadd.s32 %s376, 16
        %p378 = scmp.lt.s32.totalorder %s377, 15
        %s379 = scalar_select %p378, %s377, 15
        %s380 = smul.u32 16, %s24
        %v381 = vld [vmem:[%s344] sm:$0xff]
        %v382 = vld [vmem:[%s344 + $0x8] sm:$0xff]
        %v383 = vld [vmem:[%s344 + $0x10] sm:$0xff]
        %v384 = vld [vmem:[%s344 + $0x18] sm:$0xff]
        %v385 = vld [vmem:[%s344 + $0x20] sm:$0xff]
        %v386 = vld [vmem:[%s344 + $0x28] sm:$0xff]
        %v387 = vld [vmem:[%s344 + $0x30] sm:$0xff]
        %v388 = vld [vmem:[%s344 + $0x38] sm:$0xff]
        %v389 = vld [vmem:[%s344 + $0x40] sm:$0xff]
        %v390 = vld [vmem:[%s344 + $0x48] sm:$0xff]
        %v391 = vld [vmem:[%s344 + $0x50] sm:$0xff]
        %v392 = vld [vmem:[%s344 + $0x58] sm:$0xff]
        %v393 = vld [vmem:[%s344 + $0x60] sm:$0xff]
        %v394 = vld [vmem:[%s344 + $0x68] sm:$0xff]
        %v395 = vld [vmem:[%s344 + $0x70] sm:$0xff]
        %v396 = vld [vmem:[%s344 + $0x78] sm:$0xff]
        %v397 = vld [vmem:[%s344 + $0x80] sm:$0xff]
        %v398 = vld [vmem:[%s344 + $0x88] sm:$0xff]
        %v399 = vld [vmem:[%s344 + $0x90] sm:$0xff]
        %v400 = vld [vmem:[%s344 + $0x98] sm:$0xff]
        %v401 = vld [vmem:[%s344 + $0xa0] sm:$0xff]
        %v402 = vld [vmem:[%s344 + $0xa8] sm:$0xff]
        %v403 = vld [vmem:[%s344 + $0xb0] sm:$0xff]
        %v404 = vld [vmem:[%s344 + $0xb8] sm:$0xff]
        %v405 = vld [vmem:[%s344 + $0xc0] sm:$0xff]
        %v406 = vld [vmem:[%s344 + $0xc8] sm:$0xff]
        %v407 = vld [vmem:[%s344 + $0xd0] sm:$0xff]
        %v408 = vld [vmem:[%s344 + $0xd8] sm:$0xff]
        %v409 = vld [vmem:[%s344 + $0xe0] sm:$0xff]
        %v410 = vld [vmem:[%s344 + $0xe8] sm:$0xff]
        %v411 = vld [vmem:[%s344 + $0xf0] sm:$0xff]
        %v412 = vld [vmem:[%s344 + $0xf8] sm:$0xff]
        %s413 = scalar_lea.vmem [#allocation2], 16
        %vm414 = vcmask 523264
        %415 = vst.msk [vmem:[%s413] sm:$0xff] %vm414, %v381
        %416 = vst.msk [vmem:[%s413 + $0x8] sm:$0xff] %vm414, %v382
        %417 = vst.msk [vmem:[%s413 + $0x10] sm:$0xff] %vm414, %v383
        %418 = vst.msk [vmem:[%s413 + $0x18] sm:$0xff] %vm414, %v384
        %419 = vst.msk [vmem:[%s413 + $0x20] sm:$0xff] %vm414, %v385
        %420 = vst.msk [vmem:[%s413 + $0x28] sm:$0xff] %vm414, %v386
        %421 = vst.msk [vmem:[%s413 + $0x30] sm:$0xff] %vm414, %v387
        %422 = vst.msk [vmem:[%s413 + $0x38] sm:$0xff] %vm414, %v388
        %423 = vst.msk [vmem:[%s413 + $0x40] sm:$0xff] %vm414, %v389
        %424 = vst.msk [vmem:[%s413 + $0x48] sm:$0xff] %vm414, %v390
        %425 = vst.msk [vmem:[%s413 + $0x50] sm:$0xff] %vm414, %v391
        %426 = vst.msk [vmem:[%s413 + $0x58] sm:$0xff] %vm414, %v392
        %427 = vst.msk [vmem:[%s413 + $0x60] sm:$0xff] %vm414, %v393
        %428 = vst.msk [vmem:[%s413 + $0x68] sm:$0xff] %vm414, %v394
        %429 = vst.msk [vmem:[%s413 + $0x70] sm:$0xff] %vm414, %v395
        %430 = vst.msk [vmem:[%s413 + $0x78] sm:$0xff] %vm414, %v396
        %431 = vst.msk [vmem:[%s413 + $0x80] sm:$0xff] %vm414, %v397
        %432 = vst.msk [vmem:[%s413 + $0x88] sm:$0xff] %vm414, %v398
        %433 = vst.msk [vmem:[%s413 + $0x90] sm:$0xff] %vm414, %v399
        %434 = vst.msk [vmem:[%s413 + $0x98] sm:$0xff] %vm414, %v400
        %435 = vst.msk [vmem:[%s413 + $0xa0] sm:$0xff] %vm414, %v401
        %436 = vst.msk [vmem:[%s413 + $0xa8] sm:$0xff] %vm414, %v402
        %437 = vst.msk [vmem:[%s413 + $0xb0] sm:$0xff] %vm414, %v403
        %438 = vst.msk [vmem:[%s413 + $0xb8] sm:$0xff] %vm414, %v404
        %439 = vst.msk [vmem:[%s413 + $0xc0] sm:$0xff] %vm414, %v405
        %440 = vst.msk [vmem:[%s413 + $0xc8] sm:$0xff] %vm414, %v406
        %441 = vst.msk [vmem:[%s413 + $0xd0] sm:$0xff] %vm414, %v407
        %442 = vst.msk [vmem:[%s413 + $0xd8] sm:$0xff] %vm414, %v408
        %443 = vst.msk [vmem:[%s413 + $0xe0] sm:$0xff] %vm414, %v409
        %444 = vst.msk [vmem:[%s413 + $0xe8] sm:$0xff] %vm414, %v410
        %445 = vst.msk [vmem:[%s413 + $0xf0] sm:$0xff] %vm414, %v411
        %446 = vst.msk [vmem:[%s413 + $0xf8] sm:$0xff] %vm414, %v412
        %p447 = scmp.eq.s32.totalorder %s24, 0
        // Predicated region
        $region41: #{channel_upsample_residual.1} parent=39 // pred_check
          %p448 = pneg %p447
        $region42: #{channel_upsample_residual.1} parent=39 // pred_check_branch
          %450 = sbr.rel (%p448) target = $region44
        $region43: #{channel_upsample_residual.1} parent=39 // pred_region
          %451 = vst.msk [vmem:[#allocation2] sm:$0xff] %vm414, 0.0
          %452 = vst.msk [vmem:[#allocation2 + $0x8] sm:$0xff] %vm414, 0.0
        $region44: #{channel_upsample_residual.1} parent=39 // pred_fallthru
          _
        %p453 = scmp.gt.s32.totalorder %s24, 0
        // Predicated region
        $region45: #{channel_upsample_residual.1} parent=39 // pred_check
          %p454 = pneg %p453
        $region46: #{channel_upsample_residual.1} parent=39 // pred_check_branch
          %456 = sbr.rel (%p454) target = $region48
        $region47: #{channel_upsample_residual.1} parent=39 // pred_region
          %v457 = vld [vmem:[%s358] sm:$0xff]
          %v458 = vld [vmem:[%s358 + $0x8] sm:$0xff]
          %459 = vst.msk [vmem:[#allocation2] sm:$0xff] %vm414, %v457
          %460 = vst.msk [vmem:[#allocation2 + $0x8] sm:$0xff] %vm414, %v458
        $region48: #{channel_upsample_residual.1} parent=39 // pred_fallthru
          _
        // Predicated region
        $region49: #{channel_upsample_residual.1} parent=39 // pred_check
          %p461 = pneg %p447
        $region50: #{channel_upsample_residual.1} parent=39 // pred_check_branch
          %463 = sbr.rel (%p461) target = $region52
        $region51: #{channel_upsample_residual.1} parent=39 // pred_region
          %s464 = scalar_lea.vmem [#allocation2], 272
          %465 = vst.msk [vmem:[%s464] sm:$0xff] %vm414, 0.0
          %466 = vst.msk [vmem:[%s464 + $0x8] sm:$0xff] %vm414, 0.0
        $region52: #{channel_upsample_residual.1} parent=39 // pred_fallthru
          _
        %p467 = scmp.lt.s32.totalorder %s24, 0
        // Predicated region
        $region53: #{channel_upsample_residual.1} parent=39 // pred_check
          %p468 = pneg %p467
        $region54: #{channel_upsample_residual.1} parent=39 // pred_check_branch
          %470 = sbr.rel (%p468) target = $region56
        $region55: #{channel_upsample_residual.1} parent=39 // pred_region
          %v471 = vld [vmem:[%s375] sm:$0xff]
          %v472 = vld [vmem:[%s375 + $0x8] sm:$0xff]
          %s473 = scalar_lea.vmem [#allocation2], 272
          %474 = vst.msk [vmem:[%s473] sm:$0xff] %vm414, %v471
          %475 = vst.msk [vmem:[%s473 + $0x8] sm:$0xff] %vm414, %v472
        $region56: #{channel_upsample_residual.1} parent=39 // pred_fallthru
          _
        %v476 = vld [vmem:[#allocation2] sm:$0xff]
        %v477 = vld [vmem:[#allocation2 + $0x8] sm:$0xff]
        %v478 = vld [vmem:[#allocation2 + $0x10] sm:$0xff]
        %v479 = vld [vmem:[#allocation2 + $0x18] sm:$0xff]
        %v480 = vld [vmem:[#allocation2 + $0x20] sm:$0xff]
        %v481 = vld [vmem:[#allocation2 + $0x28] sm:$0xff]
        %v482 = vld [vmem:[#allocation2 + $0x30] sm:$0xff]
        %v483 = vld [vmem:[#allocation2 + $0x38] sm:$0xff]
        %v484 = vld [vmem:[#allocation2 + $0x40] sm:$0xff]
        %v485 = vld [vmem:[#allocation2 + $0x48] sm:$0xff]
        %v486 = vld [vmem:[#allocation2 + $0x50] sm:$0xff]
        %v487 = vld [vmem:[#allocation2 + $0x58] sm:$0xff]
        %v488 = vld [vmem:[#allocation2 + $0x60] sm:$0xff]
        %v489 = vld [vmem:[#allocation2 + $0x68] sm:$0xff]
        %v490 = vld [vmem:[#allocation2 + $0x70] sm:$0xff]
        %v491 = vld [vmem:[#allocation2 + $0x78] sm:$0xff]
        %v492 = vld [vmem:[#allocation2 + $0x80] sm:$0xff]
        %v493 = vld [vmem:[#allocation2 + $0x88] sm:$0xff]
        %v494 = vld [vmem:[#allocation2 + $0x90] sm:$0xff]
        %v495 = vld [vmem:[#allocation2 + $0x98] sm:$0xff]
        %v496 = vld [vmem:[#allocation2 + $0xa0] sm:$0xff]
        %v497 = vld [vmem:[#allocation2 + $0xa8] sm:$0xff]
        %v498 = vld [vmem:[#allocation2 + $0xb0] sm:$0xff]
        %v499 = vld [vmem:[#allocation2 + $0xb8] sm:$0xff]
        %v500 = vld [vmem:[#allocation2 + $0xc0] sm:$0xff]
        %v501 = vld [vmem:[#allocation2 + $0xc8] sm:$0xff]
        %v502 = vld [vmem:[#allocation2 + $0xd0] sm:$0xff]
        %v503 = vld [vmem:[#allocation2 + $0xd8] sm:$0xff]
        %v504 = vld [vmem:[#allocation2 + $0xe0] sm:$0xff]
        %v505 = vld [vmem:[#allocation2 + $0xe8] sm:$0xff]
        %v506 = vld [vmem:[#allocation2 + $0xf0] sm:$0xff]
        %v507 = vld [vmem:[#allocation2 + $0xf8] sm:$0xff]
        %v508 = vld [vmem:[#allocation2 + $0x100] sm:$0xff]
        %v509 = vld [vmem:[#allocation2 + $0x108] sm:$0xff]
        %v510 = vld [vmem:[#allocation2 + $0x110] sm:$0xff]
        %v511 = vld [vmem:[#allocation2 + $0x118] sm:$0xff]
        %v512 = vrot.slane %v476, 7
        %v513 = vrot.slane %v477, 7
        %v514 = vrot.slane %v478, 7
        %v515 = vrot.slane %v479, 7
        %v516 = vrot.slane %v480, 7
        %v517 = vrot.slane %v481, 7
        %v518 = vrot.slane %v482, 7
        %v519 = vrot.slane %v483, 7
        %v520 = vrot.slane %v484, 7
        %v521 = vrot.slane %v485, 7
        %v522 = vrot.slane %v486, 7
        %v523 = vrot.slane %v487, 7
        %v524 = vrot.slane %v488, 7
        %v525 = vrot.slane %v489, 7
        %v526 = vrot.slane %v490, 7
        %v527 = vrot.slane %v491, 7
        %v528 = vrot.slane %v492, 7
        %v529 = vrot.slane %v493, 7
        %v530 = vrot.slane %v494, 7
        %v531 = vrot.slane %v495, 7
        %v532 = vrot.slane %v496, 7
        %v533 = vrot.slane %v497, 7
        %v534 = vrot.slane %v498, 7
        %v535 = vrot.slane %v499, 7
        %v536 = vrot.slane %v500, 7
        %v537 = vrot.slane %v501, 7
        %v538 = vrot.slane %v502, 7
        %v539 = vrot.slane %v503, 7
        %v540 = vrot.slane %v504, 7
        %v541 = vrot.slane %v505, 7
        %v542 = vrot.slane %v506, 7
        %v543 = vrot.slane %v507, 7
        %v544 = vrot.slane %v508, 7
        %v545 = vrot.slane %v509, 7
        %v546 = vrot.slane %v510, 7
        %v547 = vrot.slane %v511, 7
        %v548 = vlaneseq
        %v549 = vshrl.u32 %v548, 7
        %vm550 = vcmp.lt.s32.totalorder %v549, 1
        %v551 = vsel %vm550, %v546, %v547
        %v552 = vsel %vm550, %v545, %v546
        %v553 = vsel %vm550, %v544, %v545
        %v554 = vsel %vm550, %v543, %v544
        %v555 = vsel %vm550, %v542, %v543
        %v556 = vsel %vm550, %v541, %v542
        %v557 = vsel %vm550, %v540, %v541
        %v558 = vsel %vm550, %v539, %v540
        %v559 = vsel %vm550, %v538, %v539
        %v560 = vsel %vm550, %v537, %v538
        %v561 = vsel %vm550, %v536, %v537
        %v562 = vsel %vm550, %v535, %v536
        %v563 = vsel %vm550, %v534, %v535
        %v564 = vsel %vm550, %v533, %v534
        %v565 = vsel %vm550, %v532, %v533
        %v566 = vsel %vm550, %v531, %v532
        %v567 = vsel %vm550, %v530, %v531
        %v568 = vsel %vm550, %v529, %v530
        %v569 = vsel %vm550, %v528, %v529
        %v570 = vsel %vm550, %v527, %v528
        %v571 = vsel %vm550, %v526, %v527
        %v572 = vsel %vm550, %v525, %v526
        %v573 = vsel %vm550, %v524, %v525
        %v574 = vsel %vm550, %v523, %v524
        %v575 = vsel %vm550, %v522, %v523
        %v576 = vsel %vm550, %v521, %v522
        %v577 = vsel %vm550, %v520, %v521
        %v578 = vsel %vm550, %v519, %v520
        %v579 = vsel %vm550, %v518, %v519
        %v580 = vsel %vm550, %v517, %v518
        %v581 = vsel %vm550, %v516, %v517
        %v582 = vsel %vm550, %v515, %v516
        %v583 = vsel %vm550, %v514, %v515
        %v584 = vsel %vm550, %v513, %v514
        %v585 = vsel %vm550, %v512, %v513
        %v586 = vsel %vm550, %v547, %v512
        %v587 = vrot.slane %v476, 1
        %v588 = vrot.slane %v477, 1
        %v589 = vrot.slane %v478, 1
        %v590 = vrot.slane %v479, 1
        %v591 = vrot.slane %v480, 1
        %v592 = vrot.slane %v481, 1
        %v593 = vrot.slane %v482, 1
        %v594 = vrot.slane %v483, 1
        %v595 = vrot.slane %v484, 1
        %v596 = vrot.slane %v485, 1
        %v597 = vrot.slane %v486, 1
        %v598 = vrot.slane %v487, 1
        %v599 = vrot.slane %v488, 1
        %v600 = vrot.slane %v489, 1
        %v601 = vrot.slane %v490, 1
        %v602 = vrot.slane %v491, 1
        %v603 = vrot.slane %v492, 1
        %v604 = vrot.slane %v493, 1
        %v605 = vrot.slane %v494, 1
        %v606 = vrot.slane %v495, 1
        %v607 = vrot.slane %v496, 1
        %v608 = vrot.slane %v497, 1
        %v609 = vrot.slane %v498, 1
        %v610 = vrot.slane %v499, 1
        %v611 = vrot.slane %v500, 1
        %v612 = vrot.slane %v501, 1
        %v613 = vrot.slane %v502, 1
        %v614 = vrot.slane %v503, 1
        %v615 = vrot.slane %v504, 1
        %v616 = vrot.slane %v505, 1
        %v617 = vrot.slane %v506, 1
        %v618 = vrot.slane %v507, 1
        %v619 = vrot.slane %v508, 1
        %v620 = vrot.slane %v509, 1
        %v621 = vrot.slane %v510, 1
        %v622 = vrot.slane %v511, 1
        %vm623 = vcmp.lt.s32.totalorder %v549, 7
        %v624 = vsel %vm623, %v621, %v622
        %v625 = vsel %vm623, %v620, %v621
        %v626 = vsel %vm623, %v619, %v620
        %v627 = vsel %vm623, %v618, %v619
        %v628 = vsel %vm623, %v617, %v618
        %v629 = vsel %vm623, %v616, %v617
        %v630 = vsel %vm623, %v615, %v616
        %v631 = vsel %vm623, %v614, %v615
        %v632 = vsel %vm623, %v613, %v614
        %v633 = vsel %vm623, %v612, %v613
        %v634 = vsel %vm623, %v611, %v612
        %v635 = vsel %vm623, %v610, %v611
        %v636 = vsel %vm623, %v609, %v610
        %v637 = vsel %vm623, %v608, %v609
        %v638 = vsel %vm623, %v607, %v608
        %v639 = vsel %vm623, %v606, %v607
        %v640 = vsel %vm623, %v605, %v606
        %v641 = vsel %vm623, %v604, %v605
        %v642 = vsel %vm623, %v603, %v604
        %v643 = vsel %vm623, %v602, %v603
        %v644 = vsel %vm623, %v601, %v602
        %v645 = vsel %vm623, %v600, %v601
        %v646 = vsel %vm623, %v599, %v600
        %v647 = vsel %vm623, %v598, %v599
        %v648 = vsel %vm623, %v597, %v598
        %v649 = vsel %vm623, %v596, %v597
        %v650 = vsel %vm623, %v595, %v596
        %v651 = vsel %vm623, %v594, %v595
        %v652 = vsel %vm623, %v593, %v594
        %v653 = vsel %vm623, %v592, %v593
        %v654 = vsel %vm623, %v591, %v592
        %v655 = vsel %vm623, %v590, %v591
        %v656 = vsel %vm623, %v589, %v590
        %v657 = vsel %vm623, %v588, %v589
        %v658 = vsel %vm623, %v587, %v588
        %v659 = vsel %vm623, %v622, %v587
        %v660 = vadd.s32 %v549, 8
        %vm661 = vcmp.eq.s32.totalorder %v549, 0
        %vm662 = vcmp.eq.s32.totalorder %v660, 0
        %v663 = vsel %vm661, 0.0, %v586
        %v664 = vsel %vm662, 0.0, %v585
        %v665 = vsel %vm661, 0.0, %v584
        %v666 = vsel %vm662, 0.0, %v583
        %v667 = vsel %vm661, 0.0, %v582
        %v668 = vsel %vm662, 0.0, %v581
        %v669 = vsel %vm661, 0.0, %v580
        %v670 = vsel %vm662, 0.0, %v579
        %v671 = vsel %vm661, 0.0, %v578
        %v672 = vsel %vm662, 0.0, %v577
        %v673 = vsel %vm661, 0.0, %v576
        %v674 = vsel %vm662, 0.0, %v575
        %v675 = vsel %vm661, 0.0, %v574
        %v676 = vsel %vm662, 0.0, %v573
        %v677 = vsel %vm661, 0.0, %v572
        %v678 = vsel %vm662, 0.0, %v571
        %v679 = vsel %vm661, 0.0, %v570
        %v680 = vsel %vm662, 0.0, %v569
        %v681 = vsel %vm661, 0.0, %v568
        %v682 = vsel %vm662, 0.0, %v567
        %v683 = vsel %vm661, 0.0, %v566
        %v684 = vsel %vm662, 0.0, %v565
        %v685 = vsel %vm661, 0.0, %v564
        %v686 = vsel %vm662, 0.0, %v563
        %v687 = vsel %vm661, 0.0, %v562
        %v688 = vsel %vm662, 0.0, %v561
        %v689 = vsel %vm661, 0.0, %v560
        %v690 = vsel %vm662, 0.0, %v559
        %v691 = vsel %vm661, 0.0, %v558
        %v692 = vsel %vm662, 0.0, %v557
        %v693 = vsel %vm661, 0.0, %v556
        %v694 = vsel %vm662, 0.0, %v555
        %v695 = vsel %vm661, 0.0, %v554
        %v696 = vsel %vm662, 0.0, %v553
        %v697 = vsel %vm661, 0.0, %v552
        %v698 = vsel %vm662, 0.0, %v551
        %vm699 = vcmp.eq.s32.totalorder %v549, 15
        %vm700 = vcmp.eq.s32.totalorder %v660, 15
        %v701 = vsel %vm699, 0.0, %v658
        %v702 = vsel %vm700, 0.0, %v657
        %v703 = vsel %vm699, 0.0, %v656
        %v704 = vsel %vm700, 0.0, %v655
        %v705 = vsel %vm699, 0.0, %v654
        %v706 = vsel %vm700, 0.0, %v653
        %v707 = vsel %vm699, 0.0, %v652
        %v708 = vsel %vm700, 0.0, %v651
        %v709 = vsel %vm699, 0.0, %v650
        %v710 = vsel %vm700, 0.0, %v649
        %v711 = vsel %vm699, 0.0, %v648
        %v712 = vsel %vm700, 0.0, %v647
        %v713 = vsel %vm699, 0.0, %v646
        %v714 = vsel %vm700, 0.0, %v645
        %v715 = vsel %vm699, 0.0, %v644
        %v716 = vsel %vm700, 0.0, %v643
        %v717 = vsel %vm699, 0.0, %v642
        %v718 = vsel %vm700, 0.0, %v641
        %v719 = vsel %vm699, 0.0, %v640
        %v720 = vsel %vm700, 0.0, %v639
        %v721 = vsel %vm699, 0.0, %v638
        %v722 = vsel %vm700, 0.0, %v637
        %v723 = vsel %vm699, 0.0, %v636
        %v724 = vsel %vm700, 0.0, %v635
        %v725 = vsel %vm699, 0.0, %v634
        %v726 = vsel %vm700, 0.0, %v633
        %v727 = vsel %vm699, 0.0, %v632
        %v728 = vsel %vm700, 0.0, %v631
        %v729 = vsel %vm699, 0.0, %v630
        %v730 = vsel %vm700, 0.0, %v629
        %v731 = vsel %vm699, 0.0, %v628
        %v732 = vsel %vm700, 0.0, %v627
        %v733 = vsel %vm699, 0.0, %v626
        %v734 = vsel %vm700, 0.0, %v625
        %v735 = vsel %vm699, 0.0, %v624
        %v736 = vsel %vm700, 0.0, %v659
        %769 = vrot.lane.b32.xlu0 %v476, 64
        %v770 = vpop.permute.xlu0 %769
        %771 = vrot.lane.b32.xlu0 %v477, 64
        %v772 = vpop.permute.xlu0 %771
        %773 = vrot.lane.b32.xlu0 %v478, 64
        %v774 = vpop.permute.xlu0 %773
        %775 = vrot.lane.b32.xlu0 %v479, 64
        %v776 = vpop.permute.xlu0 %775
        %777 = vrot.lane.b32.xlu0 %v480, 64
        %v778 = vpop.permute.xlu0 %777
        %779 = vrot.lane.b32.xlu0 %v481, 64
        %v780 = vpop.permute.xlu0 %779
        %781 = vrot.lane.b32.xlu0 %v482, 64
        %v782 = vpop.permute.xlu0 %781
        %783 = vrot.lane.b32.xlu0 %v483, 64
        %v784 = vpop.permute.xlu0 %783
        %785 = vrot.lane.b32.xlu0 %v484, 64
        %v786 = vpop.permute.xlu0 %785
        %787 = vrot.lane.b32.xlu0 %v485, 64
        %v788 = vpop.permute.xlu0 %787
        %789 = vrot.lane.b32.xlu0 %v486, 64
        %v790 = vpop.permute.xlu0 %789
        %791 = vrot.lane.b32.xlu0 %v487, 64
        %v792 = vpop.permute.xlu0 %791
        %793 = vrot.lane.b32.xlu0 %v488, 64
        %v794 = vpop.permute.xlu0 %793
        %795 = vrot.lane.b32.xlu0 %v489, 64
        %v796 = vpop.permute.xlu0 %795
        %797 = vrot.lane.b32.xlu0 %v490, 64
        %v798 = vpop.permute.xlu0 %797
        %799 = vrot.lane.b32.xlu0 %v491, 64
        %v800 = vpop.permute.xlu0 %799
        %801 = vrot.lane.b32.xlu0 %v492, 64
        %v802 = vpop.permute.xlu0 %801
        %803 = vrot.lane.b32.xlu0 %v493, 64
        %v804 = vpop.permute.xlu0 %803
        %805 = vrot.lane.b32.xlu0 %v494, 64
        %v806 = vpop.permute.xlu0 %805
        %807 = vrot.lane.b32.xlu0 %v495, 64
        %v808 = vpop.permute.xlu0 %807
        %809 = vrot.lane.b32.xlu0 %v496, 64
        %v810 = vpop.permute.xlu0 %809
        %811 = vrot.lane.b32.xlu0 %v497, 64
        %v812 = vpop.permute.xlu0 %811
        %813 = vrot.lane.b32.xlu0 %v498, 64
        %v814 = vpop.permute.xlu0 %813
        %815 = vrot.lane.b32.xlu0 %v499, 64
        %v816 = vpop.permute.xlu0 %815
        %817 = vrot.lane.b32.xlu0 %v500, 64
        %v818 = vpop.permute.xlu0 %817
        %819 = vrot.lane.b32.xlu0 %v501, 64
        %v820 = vpop.permute.xlu0 %819
        %821 = vrot.lane.b32.xlu0 %v502, 64
        %v822 = vpop.permute.xlu0 %821
        %823 = vrot.lane.b32.xlu0 %v503, 64
        %v824 = vpop.permute.xlu0 %823
        %825 = vrot.lane.b32.xlu0 %v504, 64
        %v826 = vpop.permute.xlu0 %825
        %827 = vrot.lane.b32.xlu0 %v505, 64
        %v828 = vpop.permute.xlu0 %827
        %829 = vrot.lane.b32.xlu0 %v506, 64
        %v830 = vpop.permute.xlu0 %829
        %831 = vrot.lane.b32.xlu0 %v507, 64
        %v832 = vpop.permute.xlu0 %831
        %897 = vrot.lane.b32.xlu0 %v665, 64
        %v898 = vpop.permute.xlu0 %897
        %899 = vrot.lane.b32.xlu0 %v666, 64
        %v900 = vpop.permute.xlu0 %899
        %901 = vrot.lane.b32.xlu0 %v667, 64
        %v902 = vpop.permute.xlu0 %901
        %903 = vrot.lane.b32.xlu0 %v668, 64
        %v904 = vpop.permute.xlu0 %903
        %905 = vrot.lane.b32.xlu0 %v669, 64
        %v906 = vpop.permute.xlu0 %905
        %907 = vrot.lane.b32.xlu0 %v670, 64
        %v908 = vpop.permute.xlu0 %907
        %909 = vrot.lane.b32.xlu0 %v671, 64
        %v910 = vpop.permute.xlu0 %909
        %911 = vrot.lane.b32.xlu0 %v672, 64
        %v912 = vpop.permute.xlu0 %911
        %913 = vrot.lane.b32.xlu0 %v673, 64
        %v914 = vpop.permute.xlu0 %913
        %915 = vrot.lane.b32.xlu0 %v674, 64
        %v916 = vpop.permute.xlu0 %915
        %917 = vrot.lane.b32.xlu0 %v675, 64
        %v918 = vpop.permute.xlu0 %917
        %919 = vrot.lane.b32.xlu0 %v676, 64
        %v920 = vpop.permute.xlu0 %919
        %921 = vrot.lane.b32.xlu0 %v677, 64
        %v922 = vpop.permute.xlu0 %921
        %923 = vrot.lane.b32.xlu0 %v678, 64
        %v924 = vpop.permute.xlu0 %923
        %925 = vrot.lane.b32.xlu0 %v679, 64
        %v926 = vpop.permute.xlu0 %925
        %927 = vrot.lane.b32.xlu0 %v680, 64
        %v928 = vpop.permute.xlu0 %927
        %929 = vrot.lane.b32.xlu0 %v681, 64
        %v930 = vpop.permute.xlu0 %929
        %931 = vrot.lane.b32.xlu0 %v682, 64
        %v932 = vpop.permute.xlu0 %931
        %933 = vrot.lane.b32.xlu0 %v683, 64
        %v934 = vpop.permute.xlu0 %933
        %935 = vrot.lane.b32.xlu0 %v684, 64
        %v936 = vpop.permute.xlu0 %935
        %937 = vrot.lane.b32.xlu0 %v685, 64
        %v938 = vpop.permute.xlu0 %937
        %939 = vrot.lane.b32.xlu0 %v686, 64
        %v940 = vpop.permute.xlu0 %939
        %941 = vrot.lane.b32.xlu0 %v687, 64
        %v942 = vpop.permute.xlu0 %941
        %943 = vrot.lane.b32.xlu0 %v688, 64
        %v944 = vpop.permute.xlu0 %943
        %945 = vrot.lane.b32.xlu0 %v689, 64
        %v946 = vpop.permute.xlu0 %945
        %947 = vrot.lane.b32.xlu0 %v690, 64
        %v948 = vpop.permute.xlu0 %947
        %949 = vrot.lane.b32.xlu0 %v691, 64
        %v950 = vpop.permute.xlu0 %949
        %951 = vrot.lane.b32.xlu0 %v692, 64
        %v952 = vpop.permute.xlu0 %951
        %953 = vrot.lane.b32.xlu0 %v693, 64
        %v954 = vpop.permute.xlu0 %953
        %955 = vrot.lane.b32.xlu0 %v694, 64
        %v956 = vpop.permute.xlu0 %955
        %957 = vrot.lane.b32.xlu0 %v695, 64
        %v958 = vpop.permute.xlu0 %957
        %959 = vrot.lane.b32.xlu0 %v696, 64
        %v960 = vpop.permute.xlu0 %959
        %1025 = vrot.lane.b32.xlu0 %v703, 64
        %v1026 = vpop.permute.xlu0 %1025
        %1027 = vrot.lane.b32.xlu0 %v704, 64
        %v1028 = vpop.permute.xlu0 %1027
        %1029 = vrot.lane.b32.xlu0 %v705, 64
        %v1030 = vpop.permute.xlu0 %1029
        %1031 = vrot.lane.b32.xlu0 %v706, 64
        %v1032 = vpop.permute.xlu0 %1031
        %1033 = vrot.lane.b32.xlu0 %v707, 64
        %v1034 = vpop.permute.xlu0 %1033
        %1035 = vrot.lane.b32.xlu0 %v708, 64
        %v1036 = vpop.permute.xlu0 %1035
        %1037 = vrot.lane.b32.xlu0 %v709, 64
        %v1038 = vpop.permute.xlu0 %1037
        %1039 = vrot.lane.b32.xlu0 %v710, 64
        %v1040 = vpop.permute.xlu0 %1039
        %1041 = vrot.lane.b32.xlu0 %v711, 64
        %v1042 = vpop.permute.xlu0 %1041
        %1043 = vrot.lane.b32.xlu0 %v712, 64
        %v1044 = vpop.permute.xlu0 %1043
        %1045 = vrot.lane.b32.xlu0 %v713, 64
        %v1046 = vpop.permute.xlu0 %1045
        %1047 = vrot.lane.b32.xlu0 %v714, 64
        %v1048 = vpop.permute.xlu0 %1047
        %1049 = vrot.lane.b32.xlu0 %v715, 64
        %v1050 = vpop.permute.xlu0 %1049
        %1051 = vrot.lane.b32.xlu0 %v716, 64
        %v1052 = vpop.permute.xlu0 %1051
        %1053 = vrot.lane.b32.xlu0 %v717, 64
        %v1054 = vpop.permute.xlu0 %1053
        %1055 = vrot.lane.b32.xlu0 %v718, 64
        %v1056 = vpop.permute.xlu0 %1055
        %1057 = vrot.lane.b32.xlu0 %v719, 64
        %v1058 = vpop.permute.xlu0 %1057
        %1059 = vrot.lane.b32.xlu0 %v720, 64
        %v1060 = vpop.permute.xlu0 %1059
        %1061 = vrot.lane.b32.xlu0 %v721, 64
        %v1062 = vpop.permute.xlu0 %1061
        %1063 = vrot.lane.b32.xlu0 %v722, 64
        %v1064 = vpop.permute.xlu0 %1063
        %1065 = vrot.lane.b32.xlu0 %v723, 64
        %v1066 = vpop.permute.xlu0 %1065
        %1067 = vrot.lane.b32.xlu0 %v724, 64
        %v1068 = vpop.permute.xlu0 %1067
        %1069 = vrot.lane.b32.xlu0 %v725, 64
        %v1070 = vpop.permute.xlu0 %1069
        %1071 = vrot.lane.b32.xlu0 %v726, 64
        %v1072 = vpop.permute.xlu0 %1071
        %1073 = vrot.lane.b32.xlu0 %v727, 64
        %v1074 = vpop.permute.xlu0 %1073
        %1075 = vrot.lane.b32.xlu0 %v728, 64
        %v1076 = vpop.permute.xlu0 %1075
        %1077 = vrot.lane.b32.xlu0 %v729, 64
        %v1078 = vpop.permute.xlu0 %1077
        %1079 = vrot.lane.b32.xlu0 %v730, 64
        %v1080 = vpop.permute.xlu0 %1079
        %1081 = vrot.lane.b32.xlu0 %v731, 64
        %v1082 = vpop.permute.xlu0 %1081
        %1083 = vrot.lane.b32.xlu0 %v732, 64
        %v1084 = vpop.permute.xlu0 %1083
        %1085 = vrot.lane.b32.xlu0 %v733, 64
        %v1086 = vpop.permute.xlu0 %1085
        %1087 = vrot.lane.b32.xlu0 %v734, 64
        %v1088 = vpop.permute.xlu0 %1087
        %1125 = vrot.lane.b32.xlu0 %v508, 64
        %v1126 = vpop.permute.xlu0 %1125
        %1127 = vrot.lane.b32.xlu0 %v509, 64
        %v1128 = vpop.permute.xlu0 %1127
        %1129 = vrot.lane.b32.xlu0 %v510, 64
        %v1130 = vpop.permute.xlu0 %1129
        %1131 = vrot.lane.b32.xlu0 %v511, 64
        %v1132 = vpop.permute.xlu0 %1131
        %v1137 = vsel %vm414, %v663, %v770
        %v1138 = vsel %vm414, %v664, %v772
        %v1139 = vsel %vm414, %v665, %v774
        %v1140 = vsel %vm414, %v666, %v776
        %v1141 = vsel %vm414, %v667, %v778
        %v1142 = vsel %vm414, %v668, %v780
        %v1143 = vsel %vm414, %v669, %v782
        %v1144 = vsel %vm414, %v670, %v784
        %v1145 = vsel %vm414, %v671, %v786
        %v1146 = vsel %vm414, %v672, %v788
        %v1147 = vsel %vm414, %v673, %v790
        %v1148 = vsel %vm414, %v674, %v792
        %v1149 = vsel %vm414, %v675, %v794
        %v1150 = vsel %vm414, %v676, %v796
        %v1151 = vsel %vm414, %v677, %v798
        %v1152 = vsel %vm414, %v678, %v800
        %v1153 = vsel %vm414, %v679, %v802
        %v1154 = vsel %vm414, %v680, %v804
        %v1155 = vsel %vm414, %v681, %v806
        %v1156 = vsel %vm414, %v682, %v808
        %v1157 = vsel %vm414, %v683, %v810
        %v1158 = vsel %vm414, %v684, %v812
        %v1159 = vsel %vm414, %v685, %v814
        %v1160 = vsel %vm414, %v686, %v816
        %v1161 = vsel %vm414, %v687, %v818
        %v1162 = vsel %vm414, %v688, %v820
        %v1163 = vsel %vm414, %v689, %v822
        %v1164 = vsel %vm414, %v690, %v824
        %v1165 = vsel %vm414, %v691, %v826
        %v1166 = vsel %vm414, %v692, %v828
        %v1167 = vsel %vm414, %v693, %v830
        %v1168 = vsel %vm414, %v694, %v832
        %v1169 = vsel %vm414, %v701, %v898
        %v1170 = vsel %vm414, %v702, %v900
        %v1171 = vsel %vm414, %v703, %v902
        %v1172 = vsel %vm414, %v704, %v904
        %v1173 = vsel %vm414, %v705, %v906
        %v1174 = vsel %vm414, %v706, %v908
        %v1175 = vsel %vm414, %v707, %v910
        %v1176 = vsel %vm414, %v708, %v912
        %v1177 = vsel %vm414, %v709, %v914
        %v1178 = vsel %vm414, %v710, %v916
        %v1179 = vsel %vm414, %v711, %v918
        %v1180 = vsel %vm414, %v712, %v920
        %v1181 = vsel %vm414, %v713, %v922
        %v1182 = vsel %vm414, %v714, %v924
        %v1183 = vsel %vm414, %v715, %v926
        %v1184 = vsel %vm414, %v716, %v928
        %v1185 = vsel %vm414, %v717, %v930
        %v1186 = vsel %vm414, %v718, %v932
        %v1187 = vsel %vm414, %v719, %v934
        %v1188 = vsel %vm414, %v720, %v936
        %v1189 = vsel %vm414, %v721, %v938
        %v1190 = vsel %vm414, %v722, %v940
        %v1191 = vsel %vm414, %v723, %v942
        %v1192 = vsel %vm414, %v724, %v944
        %v1193 = vsel %vm414, %v725, %v946
        %v1194 = vsel %vm414, %v726, %v948
        %v1195 = vsel %vm414, %v727, %v950
        %v1196 = vsel %vm414, %v728, %v952
        %v1197 = vsel %vm414, %v729, %v954
        %v1198 = vsel %vm414, %v730, %v956
        %v1199 = vsel %vm414, %v731, %v958
        %v1200 = vsel %vm414, %v732, %v960
        %v1201 = vsel %vm414, %v478, %v1026
        %v1202 = vsel %vm414, %v479, %v1028
        %v1203 = vsel %vm414, %v480, %v1030
        %v1204 = vsel %vm414, %v481, %v1032
        %v1205 = vsel %vm414, %v482, %v1034
        %v1206 = vsel %vm414, %v483, %v1036
        %v1207 = vsel %vm414, %v484, %v1038
        %v1208 = vsel %vm414, %v485, %v1040
        %v1209 = vsel %vm414, %v486, %v1042
        %v1210 = vsel %vm414, %v487, %v1044
        %v1211 = vsel %vm414, %v488, %v1046
        %v1212 = vsel %vm414, %v489, %v1048
        %v1213 = vsel %vm414, %v490, %v1050
        %v1214 = vsel %vm414, %v491, %v1052
        %v1215 = vsel %vm414, %v492, %v1054
        %v1216 = vsel %vm414, %v493, %v1056
        %v1217 = vsel %vm414, %v494, %v1058
        %v1218 = vsel %vm414, %v495, %v1060
        %v1219 = vsel %vm414, %v496, %v1062
        %v1220 = vsel %vm414, %v497, %v1064
        %v1221 = vsel %vm414, %v498, %v1066
        %v1222 = vsel %vm414, %v499, %v1068
        %v1223 = vsel %vm414, %v500, %v1070
        %v1224 = vsel %vm414, %v501, %v1072
        %v1225 = vsel %vm414, %v502, %v1074
        %v1226 = vsel %vm414, %v503, %v1076
        %v1227 = vsel %vm414, %v504, %v1078
        %v1228 = vsel %vm414, %v505, %v1080
        %v1229 = vsel %vm414, %v506, %v1082
        %v1230 = vsel %vm414, %v507, %v1084
        %v1231 = vsel %vm414, %v508, %v1086
        %v1232 = vsel %vm414, %v509, %v1088
        %v1233 = vsel %vm414, %v695, %v1126
        %v1234 = vsel %vm414, %v696, %v1128
        %v1235 = vsel %vm414, %v697, %v1130
        %v1236 = vsel %vm414, %v698, %v1132
        %v1237 = vld [vmem:[%s3] sm:$0xff]
        %v1238 = vld [vmem:[%s3 + $0x8] sm:$0xff]
        %v1239 = vld [vmem:[%s3 + $0x10] sm:$0xff]
        %v1240 = vld [vmem:[%s3 + $0x18] sm:$0xff]
        %v1241 = vld [vmem:[%s3 + $0x20] sm:$0xff]
        %v1242 = vld [vmem:[%s3 + $0x28] sm:$0xff]
        %v1243 = vld [vmem:[%s3 + $0x30] sm:$0xff]
        %v1244 = vld [vmem:[%s3 + $0x38] sm:$0xff]
        %v1245 = vld [vmem:[%s3 + $0x40] sm:$0xff]
        %v1246 = vld [vmem:[%s3 + $0x48] sm:$0xff]
        %v1247 = vld [vmem:[%s3 + $0x50] sm:$0xff]
        %v1248 = vld [vmem:[%s3 + $0x58] sm:$0xff]
        %v1249 = vld [vmem:[%s3 + $0x60] sm:$0xff]
        %v1250 = vld [vmem:[%s3 + $0x68] sm:$0xff]
        %v1251 = vld [vmem:[%s3 + $0x70] sm:$0xff]
        %v1252 = vld [vmem:[%s3 + $0x78] sm:$0xff]
        %v1253 = vld [vmem:[%s3 + $0x80] sm:$0xff]
        %v1254 = vld [vmem:[%s3 + $0x88] sm:$0xff]
        %v1255 = vld [vmem:[%s3 + $0x90] sm:$0xff]
        %v1256 = vld [vmem:[%s3 + $0x98] sm:$0xff]
        %v1257 = vld [vmem:[%s3 + $0xa0] sm:$0xff]
        %v1258 = vld [vmem:[%s3 + $0xa8] sm:$0xff]
        %v1259 = vld [vmem:[%s3 + $0xb0] sm:$0xff]
        %v1260 = vld [vmem:[%s3 + $0xb8] sm:$0xff]
        %v1261 = vld [vmem:[%s3 + $0xc0] sm:$0xff]
        %v1262 = vld [vmem:[%s3 + $0xc8] sm:$0xff]
        %v1263 = vld [vmem:[%s3 + $0xd0] sm:$0xff]
        %v1264 = vld [vmem:[%s3 + $0xd8] sm:$0xff]
        %v1265 = vld [vmem:[%s3 + $0xe0] sm:$0xff]
        %v1266 = vld [vmem:[%s3 + $0xe8] sm:$0xff]
        %v1267 = vld [vmem:[%s3 + $0xf0] sm:$0xff]
        %v1268 = vld [vmem:[%s3 + $0xf8] sm:$0xff]
        %v1269 = vld [vmem:[%s3 + $0x100] sm:$0xff]
        %v1270 = vld [vmem:[%s3 + $0x108] sm:$0xff]
        %v1271 = vld [vmem:[%s3 + $0x110] sm:$0xff]
        %v1272 = vld [vmem:[%s3 + $0x118] sm:$0xff]
        %v1273 = vld [vmem:[%s3 + $0x120] sm:$0xff]
        %v1274 = vld [vmem:[%s3 + $0x128] sm:$0xff]
        %v1275 = vld [vmem:[%s3 + $0x130] sm:$0xff]
        %v1276 = vld [vmem:[%s3 + $0x138] sm:$0xff]
        %v1277 = vld [vmem:[%s3 + $0x140] sm:$0xff]
        %v1278 = vld [vmem:[%s3 + $0x148] sm:$0xff]
        %v1279 = vld [vmem:[%s3 + $0x150] sm:$0xff]
        %v1280 = vld [vmem:[%s3 + $0x158] sm:$0xff]
        %v1281 = vld [vmem:[%s3 + $0x160] sm:$0xff]
        %v1282 = vld [vmem:[%s3 + $0x168] sm:$0xff]
        %v1283 = vld [vmem:[%s3 + $0x170] sm:$0xff]
        %v1284 = vld [vmem:[%s3 + $0x178] sm:$0xff]
        %v1285 = vld [vmem:[%s3 + $0x180] sm:$0xff]
        %v1286 = vld [vmem:[%s3 + $0x188] sm:$0xff]
        %v1287 = vld [vmem:[%s3 + $0x190] sm:$0xff]
        %v1288 = vld [vmem:[%s3 + $0x198] sm:$0xff]
        %v1289 = vld [vmem:[%s3 + $0x1a0] sm:$0xff]
        %v1290 = vld [vmem:[%s3 + $0x1a8] sm:$0xff]
        %v1291 = vld [vmem:[%s3 + $0x1b0] sm:$0xff]
        %v1292 = vld [vmem:[%s3 + $0x1b8] sm:$0xff]
        %v1293 = vld [vmem:[%s3 + $0x1c0] sm:$0xff]
        %v1294 = vld [vmem:[%s3 + $0x1c8] sm:$0xff]
        %v1295 = vld [vmem:[%s3 + $0x1d0] sm:$0xff]
        %v1296 = vld [vmem:[%s3 + $0x1d8] sm:$0xff]
        %v1297 = vld [vmem:[%s3 + $0x1e0] sm:$0xff]
        %v1298 = vld [vmem:[%s3 + $0x1e8] sm:$0xff]
        %v1299 = vld [vmem:[%s3 + $0x1f0] sm:$0xff]
        %v1300 = vld [vmem:[%s3 + $0x1f8] sm:$0xff]
        %v1301 = vld [vmem:[%s3 + $0x200] sm:$0xff]
        %v1302 = vld [vmem:[%s3 + $0x208] sm:$0xff]
        %v1303 = vld [vmem:[%s3 + $0x210] sm:$0xff]
        %v1304 = vld [vmem:[%s3 + $0x218] sm:$0xff]
        %v1305 = vld [vmem:[%s3 + $0x220] sm:$0xff]
        %v1306 = vld [vmem:[%s3 + $0x228] sm:$0xff]
        %v1307 = vld [vmem:[%s3 + $0x230] sm:$0xff]
        %v1308 = vld [vmem:[%s3 + $0x238] sm:$0xff]
        %v1309 = vld [vmem:[%s4] sm:$0x1]
        %v1311 = vlaneseq
        %v1312 = vshrl.u32 %v1311, 7
        %v1313 = vsub.s32 0, %v1312
        %v1314 = vrot.slane %v1309, %v1313
        %v1316 = vsel %vm414, %v705, 0
        %v1318 = vsel %vm414, %v706, 0
        %v1320 = vsel %vm414, %v707, 0
        %v1322 = vsel %vm414, %v708, 0
        %v1324 = vsel %vm414, %v709, 0
        %v1326 = vsel %vm414, %v710, 0
        %v1328 = vsel %vm414, %v711, 0
        %v1330 = vsel %vm414, %v712, 0
        %v1332 = vsel %vm414, %v713, 0
        %v1334 = vsel %vm414, %v714, 0
        %v1336 = vsel %vm414, %v715, 0
        %v1338 = vsel %vm414, %v716, 0
        %v1340 = vsel %vm414, %v717, 0
        %v1342 = vsel %vm414, %v718, 0
        %v1344 = vsel %vm414, %v719, 0
        %v1346 = vsel %vm414, %v720, 0
        %v1348 = vsel %vm414, %v721, 0
        %v1350 = vsel %vm414, %v722, 0
        %v1352 = vsel %vm414, %v723, 0
        %v1354 = vsel %vm414, %v724, 0
        %v1356 = vsel %vm414, %v725, 0
        %v1358 = vsel %vm414, %v726, 0
        %v1360 = vsel %vm414, %v727, 0
        %v1362 = vsel %vm414, %v728, 0
        %v1364 = vsel %vm414, %v729, 0
        %v1366 = vsel %vm414, %v730, 0
        %v1368 = vsel %vm414, %v731, 0
        %v1370 = vsel %vm414, %v732, 0
        %v1372 = vsel %vm414, %v733, 0
        %v1374 = vsel %vm414, %v734, 0
        %v1377 = vsel %vm414, %v735, 0
        %v1380 = vsel %vm414, %v736, 0
        %1382 = vmatprep.subr.mxu0 0.0
        %1383 = vmatpush1.msra.mxu0 %v1237
        %1384 = vmatprep.subr.mxu0 0.0
        %1385 = vmatpush1.msra.mxu0 %v1238
        %1386 = vmatprep.subr.mxu0 0.0
        %1387 = vmatpush1.msra.mxu0 %v1239
        %1388 = vmatprep.subr.mxu0 0.0
        %1389 = vmatpush1.msra.mxu0 %v1240
        %1390 = vmatprep.subr.mxu0 0.0
        %1391 = vmatpush1.msra.mxu0 %v1241
        %1392 = vmatprep.subr.mxu0 0.0
        %1393 = vmatpush1.msra.mxu0 %v1242
        %1394 = vmatprep.subr.mxu0 0.0
        %1395 = vmatpush1.msra.mxu0 %v1243
        %1396 = vmatprep.subr.mxu0 0.0
        %1397 = vmatpush1.msra.mxu0 %v1244
        %1398 = vmatprep.subr.mxu0 0.0
        %1399 = vmatpush1.msra.mxu0 %v1245
        %1400 = vmatprep.subr.mxu0 0.0
        %1401 = vmatpush1.msra.mxu0 %v1246
        %1402 = vmatprep.subr.mxu0 0.0
        %1403 = vmatpush1.msra.mxu0 %v1247
        %1404 = vmatprep.subr.mxu0 0.0
        %1405 = vmatpush1.msra.mxu0 %v1248
        %1406 = vmatprep.subr.mxu0 0.0
        %1407 = vmatpush1.msra.mxu0 %v1249
        %1408 = vmatprep.subr.mxu0 0.0
        %1409 = vmatpush1.msra.mxu0 %v1250
        %1410 = vmatprep.subr.mxu0 0.0
        %1411 = vmatpush1.msra.mxu0 %v1251
        %1412 = vmatprep.subr.mxu0 0.0
        %1413 = vmatpush1.msra.mxu0 %v1252
        %1414 = vmatprep.subr.mxu0 0.0
        %1415 = vmatpush1.msra.mxu0 %v1253
        %1416 = vmatprep.subr.mxu0 0.0
        %1417 = vmatpush1.msra.mxu0 %v1254
        %1418 = vmatprep.subr.mxu0 0.0
        %1419 = vmatpush1.msra.mxu0 %v1255
        %1420 = vmatprep.subr.mxu0 0.0
        %1421 = vmatpush1.msra.mxu0 %v1256
        %1422 = vmatprep.subr.mxu0 0.0
        %1423 = vmatpush1.msra.mxu0 %v1257
        %1424 = vmatprep.subr.mxu0 0.0
        %1425 = vmatpush1.msra.mxu0 %v1258
        %1426 = vmatprep.subr.mxu0 0.0
        %1427 = vmatpush1.msra.mxu0 %v1259
        %1428 = vmatprep.subr.mxu0 0.0
        %1429 = vmatpush1.msra.mxu0 %v1260
        %1430 = vmatprep.subr.mxu0 0.0
        %1431 = vmatpush1.msra.mxu0 %v1261
        %1432 = vmatprep.subr.mxu0 0.0
        %1433 = vmatpush1.msra.mxu0 %v1262
        %1434 = vmatprep.subr.mxu0 0.0
        %1435 = vmatpush1.msra.mxu0 %v1263
        %1436 = vmatprep.subr.mxu0 0.0
        %1437 = vmatpush1.msra.mxu0 %v1264
        %1438 = vmatprep.subr.mxu0 0.0
        %1439 = vmatpush1.msra.mxu0 %v1265
        %1440 = vmatprep.subr.mxu0 0.0
        %1441 = vmatpush1.msra.mxu0 %v1266
        %1442 = vmatprep.subr.mxu0 0.0
        %1443 = vmatpush1.msra.mxu0 %v1267
        %1444 = vmatprep.subr.mxu0 0.0
        %1445 = vmatpush1.msra.mxu0 %v1268
        %1446 = vmatprep.mubr.f32.mxu0 %v1169
        %1447 = vmatmul.mubr.f32.gmra.mrb[0].mxu0 %v1137
        %v1448 = vpop.f32.mrb[0].mxu0
        %v1449 = vadd.f32 %v1314, %v1448
        %v1450 = vpop.f32.mrb[0].mxu0
        %1451 = vmatprep.mubr.f32.mxu0 %v1170
        %1452 = vmatmul.mubr.f32.gmra.mrb[0].mxu0 %v1138
        %v1453 = vpop.f32.mrb[0].mxu0
        %v1454 = vadd.f32 %v1314, %v1453
        %v1455 = vpop.f32.mrb[0].mxu0
        %1456 = vmatprep.mubr.f32.mxu0 %v1171
        %1457 = vmatmul.mubr.f32.gmra.mrb[0].mxu0 %v1139
        %v1458 = vpop.f32.mrb[0].mxu0
        %v1459 = vadd.f32 %v1314, %v1458
        %v1460 = vpop.f32.mrb[0].mxu0
        %1461 = vmatprep.mubr.f32.mxu0 %v1172
        %1462 = vmatmul.mubr.f32.gmra.mrb[0].mxu0 %v1140
        %v1463 = vpop.f32.mrb[0].mxu0
        %v1464 = vadd.f32 %v1314, %v1463
        %v1465 = vpop.f32.mrb[0].mxu0
        %1466 = vmatprep.mubr.f32.mxu0 %v1173
        %1467 = vmatmul.mubr.f32.gmra.mrb[0].mxu0 %v1141
        %v1468 = vpop.f32.mrb[0].mxu0
        %v1469 = vadd.f32 %v1314, %v1468
        %v1470 = vpop.f32.mrb[0].mxu0
        %1471 = vmatprep.mubr.f32.mxu0 %v1174
        %1472 = vmatmul.mubr.f32.gmra.mrb[0].mxu0 %v1142
        %v1473 = vpop.f32.mrb[0].mxu0
        %v1474 = vadd.f32 %v1314, %v1473
        %v1475 = vpop.f32.mrb[0].mxu0
        %1476 = vmatprep.mubr.f32.mxu0 %v1175
        %1477 = vmatmul.mubr.f32.gmra.mrb[0].mxu0 %v1143
        %v1478 = vpop.f32.mrb[0].mxu0
        %v1479 = vadd.f32 %v1314, %v1478
        %v1480 = vpop.f32.mrb[0].mxu0
        %1481 = vmatprep.mubr.f32.mxu0 %v1176
        %1482 = vmatmul.mubr.f32.gmra.mrb[0].mxu0 %v1144
        %v1483 = vpop.f32.mrb[0].mxu0
        %v1484 = vadd.f32 %v1314, %v1483
        %v1485 = vpop.f32.mrb[0].mxu0
        %1486 = vmatprep.mubr.f32.mxu0 %v1177
        %1487 = vmatmul.mubr.f32.gmra.mrb[0].mxu0 %v1145
        %v1488 = vpop.f32.mrb[0].mxu0
        %v1489 = vadd.f32 %v1314, %v1488
        %v1490 = vpop.f32.mrb[0].mxu0
        %1491 = vmatprep.mubr.f32.mxu0 %v1178
        %1492 = vmatmul.mubr.f32.gmra.mrb[0].mxu0 %v1146
        %v1493 = vpop.f32.mrb[0].mxu0
        %v1494 = vadd.f32 %v1314, %v1493
        %v1495 = vpop.f32.mrb[0].mxu0
        %1496 = vmatprep.mubr.f32.mxu0 %v1179
        %1497 = vmatmul.mubr.f32.gmra.mrb[0].mxu0 %v1147
        %v1498 = vpop.f32.mrb[0].mxu0
        %v1499 = vadd.f32 %v1314, %v1498
        %v1500 = vpop.f32.mrb[0].mxu0
        %1501 = vmatprep.mubr.f32.mxu0 %v1180
        %1502 = vmatmul.mubr.f32.gmra.mrb[0].mxu0 %v1148
        %v1503 = vpop.f32.mrb[0].mxu0
        %v1504 = vadd.f32 %v1314, %v1503
        %v1505 = vpop.f32.mrb[0].mxu0
        %1506 = vmatprep.mubr.f32.mxu0 %v1181
        %1507 = vmatmul.mubr.f32.gmra.mrb[0].mxu0 %v1149
        %v1508 = vpop.f32.mrb[0].mxu0
        %v1509 = vadd.f32 %v1314, %v1508
        %v1510 = vpop.f32.mrb[0].mxu0
        %1511 = vmatprep.mubr.f32.mxu0 %v1182
        %1512 = vmatmul.mubr.f32.gmra.mrb[0].mxu0 %v1150
        %v1513 = vpop.f32.mrb[0].mxu0
        %v1514 = vadd.f32 %v1314, %v1513
        %v1515 = vpop.f32.mrb[0].mxu0
        %1516 = vmatprep.mubr.f32.mxu0 %v1183
        %1517 = vmatmul.mubr.f32.gmra.mrb[0].mxu0 %v1151
        %v1518 = vpop.f32.mrb[0].mxu0
        %v1519 = vadd.f32 %v1314, %v1518
        %v1520 = vpop.f32.mrb[0].mxu0
        %1521 = vmatprep.mubr.f32.mxu0 %v1184
        %1522 = vmatmul.mubr.f32.gmra.mrb[0].mxu0 %v1152
        %v1523 = vpop.f32.mrb[0].mxu0
        %v1524 = vadd.f32 %v1314, %v1523
        %v1525 = vpop.f32.mrb[0].mxu0
        %1526 = vmatprep.mubr.f32.mxu0 %v1185
        %1527 = vmatmul.mubr.f32.gmra.mrb[0].mxu0 %v1153
        %v1528 = vpop.f32.mrb[0].mxu0
        %v1529 = vadd.f32 %v1314, %v1528
        %v1530 = vpop.f32.mrb[0].mxu0
        %1531 = vmatprep.mubr.f32.mxu0 %v1186
        %1532 = vmatmul.mubr.f32.gmra.mrb[0].mxu0 %v1154
        %v1533 = vpop.f32.mrb[0].mxu0
        %v1534 = vadd.f32 %v1314, %v1533
        %v1535 = vpop.f32.mrb[0].mxu0
        %1536 = vmatprep.mubr.f32.mxu0 %v1187
        %1537 = vmatmul.mubr.f32.gmra.mrb[0].mxu0 %v1155
        %v1538 = vpop.f32.mrb[0].mxu0
        %v1539 = vadd.f32 %v1314, %v1538
        %v1540 = vpop.f32.mrb[0].mxu0
        %1541 = vmatprep.mubr.f32.mxu0 %v1188
        %1542 = vmatmul.mubr.f32.gmra.mrb[0].mxu0 %v1156
        %v1543 = vpop.f32.mrb[0].mxu0
        %v1544 = vadd.f32 %v1314, %v1543
        %v1545 = vpop.f32.mrb[0].mxu0
        %1546 = vmatprep.mubr.f32.mxu0 %v1189
        %1547 = vmatmul.mubr.f32.gmra.mrb[0].mxu0 %v1157
        %v1548 = vpop.f32.mrb[0].mxu0
        %v1549 = vadd.f32 %v1314, %v1548
        %v1550 = vpop.f32.mrb[0].mxu0
        %1551 = vmatprep.mubr.f32.mxu0 %v1190
        %1552 = vmatmul.mubr.f32.gmra.mrb[0].mxu0 %v1158
        %v1553 = vpop.f32.mrb[0].mxu0
        %v1554 = vadd.f32 %v1314, %v1553
        %v1555 = vpop.f32.mrb[0].mxu0
        %1556 = vmatprep.mubr.f32.mxu0 %v1191
        %1557 = vmatmul.mubr.f32.gmra.mrb[0].mxu0 %v1159
        %v1558 = vpop.f32.mrb[0].mxu0
        %v1559 = vadd.f32 %v1314, %v1558
        %v1560 = vpop.f32.mrb[0].mxu0
        %1561 = vmatprep.mubr.f32.mxu0 %v1192
        %1562 = vmatmul.mubr.f32.gmra.mrb[0].mxu0 %v1160
        %v1563 = vpop.f32.mrb[0].mxu0
        %v1564 = vadd.f32 %v1314, %v1563
        %v1565 = vpop.f32.mrb[0].mxu0
        %1566 = vmatprep.mubr.f32.mxu0 %v1193
        %1567 = vmatmul.mubr.f32.gmra.mrb[0].mxu0 %v1161
        %v1568 = vpop.f32.mrb[0].mxu0
        %v1569 = vadd.f32 %v1314, %v1568
        %v1570 = vpop.f32.mrb[0].mxu0
        %1571 = vmatprep.mubr.f32.mxu0 %v1194
        %1572 = vmatmul.mubr.f32.gmra.mrb[0].mxu0 %v1162
        %v1573 = vpop.f32.mrb[0].mxu0
        %v1574 = vadd.f32 %v1314, %v1573
        %v1575 = vpop.f32.mrb[0].mxu0
        %1576 = vmatprep.mubr.f32.mxu0 %v1195
        %1577 = vmatmul.mubr.f32.gmra.mrb[0].mxu0 %v1163
        %v1578 = vpop.f32.mrb[0].mxu0
        %v1579 = vadd.f32 %v1314, %v1578
        %v1580 = vpop.f32.mrb[0].mxu0
        %1581 = vmatprep.mubr.f32.mxu0 %v1196
        %1582 = vmatmul.mubr.f32.gmra.mrb[0].mxu0 %v1164
        %v1583 = vpop.f32.mrb[0].mxu0
        %v1584 = vadd.f32 %v1314, %v1583
        %v1585 = vpop.f32.mrb[0].mxu0
        %1586 = vmatprep.mubr.f32.mxu0 %v1197
        %1587 = vmatmul.mubr.f32.gmra.mrb[0].mxu0 %v1165
        %v1588 = vpop.f32.mrb[0].mxu0
        %v1589 = vadd.f32 %v1314, %v1588
        %v1590 = vpop.f32.mrb[0].mxu0
        %1591 = vmatprep.mubr.f32.mxu0 %v1198
        %1592 = vmatmul.mubr.f32.gmra.mrb[0].mxu0 %v1166
        %v1593 = vpop.f32.mrb[0].mxu0
        %v1594 = vadd.f32 %v1314, %v1593
        %v1595 = vpop.f32.mrb[0].mxu0
        %1596 = vmatprep.mubr.f32.mxu0 %v1199
        %1597 = vmatmul.mubr.f32.gmra.mrb[0].mxu0 %v1167
        %v1598 = vpop.f32.mrb[0].mxu0
        %v1599 = vadd.f32 %v1314, %v1598
        %v1600 = vpop.f32.mrb[0].mxu0
        %1601 = vmatprep.mubr.f32.mxu0 %v1200
        %1602 = vmatmul.mubr.f32.gmra.mrb[0].mxu0 %v1168
        %v1603 = vpop.f32.mrb[0].mxu0
        %v1604 = vadd.f32 %v1314, %v1603
        %v1605 = vpop.f32.mrb[0].mxu0
        %1606 = vdwg.mxu0
        %1607 = vmatprep.subr.mxu0 0.0
        %1608 = vmatpush1.msra.mxu0 %v1269
        %1609 = vmatprep.subr.mxu0 0.0
        %1610 = vmatpush1.msra.mxu0 %v1270
        %1611 = vmatprep.subr.mxu0 0.0
        %1612 = vmatpush1.msra.mxu0 %v1271
        %1613 = vmatprep.subr.mxu0 0.0
        %1614 = vmatpush1.msra.mxu0 %v1272
        %1615 = vmatprep.subr.mxu0 0.0
        %1616 = vmatpush1.msra.mxu0 %v1273
        %1617 = vmatprep.subr.mxu0 0.0
        %1618 = vmatpush1.msra.mxu0 %v1274
        %1619 = vmatprep.subr.mxu0 0.0
        %1620 = vmatpush1.msra.mxu0 %v1275
        %1621 = vmatprep.subr.mxu0 0.0
        %1622 = vmatpush1.msra.mxu0 %v1276
        %1623 = vmatprep.subr.mxu0 0.0
        %1624 = vmatpush1.msra.mxu0 %v1277
        %1625 = vmatprep.subr.mxu0 0.0
        %1626 = vmatpush1.msra.mxu0 %v1278
        %1627 = vmatprep.subr.mxu0 0.0
        %1628 = vmatpush1.msra.mxu0 %v1279
        %1629 = vmatprep.subr.mxu0 0.0
        %1630 = vmatpush1.msra.mxu0 %v1280
        %1631 = vmatprep.subr.mxu0 0.0
        %1632 = vmatpush1.msra.mxu0 %v1281
        %1633 = vmatprep.subr.mxu0 0.0
        %1634 = vmatpush1.msra.mxu0 %v1282
        %1635 = vmatprep.subr.mxu0 0.0
        %1636 = vmatpush1.msra.mxu0 %v1283
        %1637 = vmatprep.subr.mxu0 0.0
        %1638 = vmatpush1.msra.mxu0 %v1284
        %1639 = vmatprep.subr.mxu0 0.0
        %1640 = vmatpush1.msra.mxu0 %v1285
        %1641 = vmatprep.subr.mxu0 0.0
        %1642 = vmatpush1.msra.mxu0 %v1286
        %1643 = vmatprep.subr.mxu0 0.0
        %1644 = vmatpush1.msra.mxu0 %v1287
        %1645 = vmatprep.subr.mxu0 0.0
        %1646 = vmatpush1.msra.mxu0 %v1288
        %1647 = vmatprep.subr.mxu0 0.0
        %1648 = vmatpush1.msra.mxu0 %v1289
        %1649 = vmatprep.subr.mxu0 0.0
        %1650 = vmatpush1.msra.mxu0 %v1290
        %1651 = vmatprep.subr.mxu0 0.0
        %1652 = vmatpush1.msra.mxu0 %v1291
        %1653 = vmatprep.subr.mxu0 0.0
        %1654 = vmatpush1.msra.mxu0 %v1292
        %1655 = vmatprep.subr.mxu0 0.0
        %1656 = vmatpush1.msra.mxu0 %v1293
        %1657 = vmatprep.subr.mxu0 0.0
        %1658 = vmatpush1.msra.mxu0 %v1294
        %1659 = vmatprep.subr.mxu0 0.0
        %1660 = vmatpush1.msra.mxu0 %v1295
        %1661 = vmatprep.subr.mxu0 0.0
        %1662 = vmatpush1.msra.mxu0 %v1296
        %1663 = vmatprep.subr.mxu0 0.0
        %1664 = vmatpush1.msra.mxu0 %v1297
        %1665 = vmatprep.subr.mxu0 0.0
        %1666 = vmatpush1.msra.mxu0 %v1298
        %1667 = vmatprep.subr.mxu0 0.0
        %1668 = vmatpush1.msra.mxu0 %v1299
        %1669 = vmatprep.subr.mxu0 0.0
        %1670 = vmatpush1.msra.mxu0 %v1300
        %1671 = vmatprep.mubr.f32.mxu0 %v1141
        %1672 = vmatmul.mubr.f32.gmra.mrb[0].mxu0 %v1201
        %v1673 = vpop.f32.mrb[0].mxu0
        %v1674 = vadd.f32 %v1449, %v1673
        %v1675 = vpop.f32.mrb[0].mxu0
        %1676 = vmatprep.mubr.f32.mxu0 %v1142
        %1677 = vmatmul.mubr.f32.gmra.mrb[0].mxu0 %v1202
        %v1678 = vpop.f32.mrb[0].mxu0
        %v1679 = vadd.f32 %v1454, %v1678
        %v1680 = vpop.f32.mrb[0].mxu0
        %1681 = vmatprep.mubr.f32.mxu0 %v1143
        %1682 = vmatmul.mubr.f32.gmra.mrb[0].mxu0 %v1203
        %v1683 = vpop.f32.mrb[0].mxu0
        %v1684 = vadd.f32 %v1459, %v1683
        %v1685 = vpop.f32.mrb[0].mxu0
        %1686 = vmatprep.mubr.f32.mxu0 %v1144
        %1687 = vmatmul.mubr.f32.gmra.mrb[0].mxu0 %v1204
        %v1688 = vpop.f32.mrb[0].mxu0
        %v1689 = vadd.f32 %v1464, %v1688
        %v1690 = vpop.f32.mrb[0].mxu0
        %1691 = vmatprep.mubr.f32.mxu0 %v1145
        %1692 = vmatmul.mubr.f32.gmra.mrb[0].mxu0 %v1205
        %v1693 = vpop.f32.mrb[0].mxu0
        %v1694 = vadd.f32 %v1469, %v1693
        %v1695 = vpop.f32.mrb[0].mxu0
        %1696 = vmatprep.mubr.f32.mxu0 %v1146
        %1697 = vmatmul.mubr.f32.gmra.mrb[0].mxu0 %v1206
        %v1698 = vpop.f32.mrb[0].mxu0
        %v1699 = vadd.f32 %v1474, %v1698
        %v1700 = vpop.f32.mrb[0].mxu0
        %1701 = vmatprep.mubr.f32.mxu0 %v1147
        %1702 = vmatmul.mubr.f32.gmra.mrb[0].mxu0 %v1207
        %v1703 = vpop.f32.mrb[0].mxu0
        %v1704 = vadd.f32 %v1479, %v1703
        %v1705 = vpop.f32.mrb[0].mxu0
        %1706 = vmatprep.mubr.f32.mxu0 %v1148
        %1707 = vmatmul.mubr.f32.gmra.mrb[0].mxu0 %v1208
        %v1708 = vpop.f32.mrb[0].mxu0
        %v1709 = vadd.f32 %v1484, %v1708
        %v1710 = vpop.f32.mrb[0].mxu0
        %1711 = vmatprep.mubr.f32.mxu0 %v1149
        %1712 = vmatmul.mubr.f32.gmra.mrb[0].mxu0 %v1209
        %v1713 = vpop.f32.mrb[0].mxu0
        %v1714 = vadd.f32 %v1489, %v1713
        %v1715 = vpop.f32.mrb[0].mxu0
        %1716 = vmatprep.mubr.f32.mxu0 %v1150
        %1717 = vmatmul.mubr.f32.gmra.mrb[0].mxu0 %v1210
        %v1718 = vpop.f32.mrb[0].mxu0
        %v1719 = vadd.f32 %v1494, %v1718
        %v1720 = vpop.f32.mrb[0].mxu0
        %1721 = vmatprep.mubr.f32.mxu0 %v1151
        %1722 = vmatmul.mubr.f32.gmra.mrb[0].mxu0 %v1211
        %v1723 = vpop.f32.mrb[0].mxu0
        %v1724 = vadd.f32 %v1499, %v1723
        %v1725 = vpop.f32.mrb[0].mxu0
        %1726 = vmatprep.mubr.f32.mxu0 %v1152
        %1727 = vmatmul.mubr.f32.gmra.mrb[0].mxu0 %v1212
        %v1728 = vpop.f32.mrb[0].mxu0
        %v1729 = vadd.f32 %v1504, %v1728
        %v1730 = vpop.f32.mrb[0].mxu0
        %1731 = vmatprep.mubr.f32.mxu0 %v1153
        %1732 = vmatmul.mubr.f32.gmra.mrb[0].mxu0 %v1213
        %v1733 = vpop.f32.mrb[0].mxu0
        %v1734 = vadd.f32 %v1509, %v1733
        %v1735 = vpop.f32.mrb[0].mxu0
        %1736 = vmatprep.mubr.f32.mxu0 %v1154
        %1737 = vmatmul.mubr.f32.gmra.mrb[0].mxu0 %v1214
        %v1738 = vpop.f32.mrb[0].mxu0
        %v1739 = vadd.f32 %v1514, %v1738
        %v1740 = vpop.f32.mrb[0].mxu0
        %1741 = vmatprep.mubr.f32.mxu0 %v1155
        %1742 = vmatmul.mubr.f32.gmra.mrb[0].mxu0 %v1215
        %v1743 = vpop.f32.mrb[0].mxu0
        %v1744 = vadd.f32 %v1519, %v1743
        %v1745 = vpop.f32.mrb[0].mxu0
        %1746 = vmatprep.mubr.f32.mxu0 %v1156
        %1747 = vmatmul.mubr.f32.gmra.mrb[0].mxu0 %v1216
        %v1748 = vpop.f32.mrb[0].mxu0
        %v1749 = vadd.f32 %v1524, %v1748
        %v1750 = vpop.f32.mrb[0].mxu0
        %1751 = vmatprep.mubr.f32.mxu0 %v1157
        %1752 = vmatmul.mubr.f32.gmra.mrb[0].mxu0 %v1217
        %v1753 = vpop.f32.mrb[0].mxu0
        %v1754 = vadd.f32 %v1529, %v1753
        %v1755 = vpop.f32.mrb[0].mxu0
        %1756 = vmatprep.mubr.f32.mxu0 %v1158
        %1757 = vmatmul.mubr.f32.gmra.mrb[0].mxu0 %v1218
        %v1758 = vpop.f32.mrb[0].mxu0
        %v1759 = vadd.f32 %v1534, %v1758
        %v1760 = vpop.f32.mrb[0].mxu0
        %1761 = vmatprep.mubr.f32.mxu0 %v1159
        %1762 = vmatmul.mubr.f32.gmra.mrb[0].mxu0 %v1219
        %v1763 = vpop.f32.mrb[0].mxu0
        %v1764 = vadd.f32 %v1539, %v1763
        %v1765 = vpop.f32.mrb[0].mxu0
        %1766 = vmatprep.mubr.f32.mxu0 %v1160
        %1767 = vmatmul.mubr.f32.gmra.mrb[0].mxu0 %v1220
        %v1768 = vpop.f32.mrb[0].mxu0
        %v1769 = vadd.f32 %v1544, %v1768
        %v1770 = vpop.f32.mrb[0].mxu0
        %1771 = vmatprep.mubr.f32.mxu0 %v1161
        %1772 = vmatmul.mubr.f32.gmra.mrb[0].mxu0 %v1221
        %v1773 = vpop.f32.mrb[0].mxu0
        %v1774 = vadd.f32 %v1549, %v1773
        %v1775 = vpop.f32.mrb[0].mxu0
        %1776 = vmatprep.mubr.f32.mxu0 %v1162
        %1777 = vmatmul.mubr.f32.gmra.mrb[0].mxu0 %v1222
        %v1778 = vpop.f32.mrb[0].mxu0
        %v1779 = vadd.f32 %v1554, %v1778
        %v1780 = vpop.f32.mrb[0].mxu0
        %1781 = vmatprep.mubr.f32.mxu0 %v1163
        %1782 = vmatmul.mubr.f32.gmra.mrb[0].mxu0 %v1223
        %v1783 = vpop.f32.mrb[0].mxu0
        %v1784 = vadd.f32 %v1559, %v1783
        %v1785 = vpop.f32.mrb[0].mxu0
        %1786 = vmatprep.mubr.f32.mxu0 %v1164
        %1787 = vmatmul.mubr.f32.gmra.mrb[0].mxu0 %v1224
        %v1788 = vpop.f32.mrb[0].mxu0
        %v1789 = vadd.f32 %v1564, %v1788
        %v1790 = vpop.f32.mrb[0].mxu0
        %1791 = vmatprep.mubr.f32.mxu0 %v1165
        %1792 = vmatmul.mubr.f32.gmra.mrb[0].mxu0 %v1225
        %v1793 = vpop.f32.mrb[0].mxu0
        %v1794 = vadd.f32 %v1569, %v1793
        %v1795 = vpop.f32.mrb[0].mxu0
        %1796 = vmatprep.mubr.f32.mxu0 %v1166
        %1797 = vmatmul.mubr.f32.gmra.mrb[0].mxu0 %v1226
        %v1798 = vpop.f32.mrb[0].mxu0
        %v1799 = vadd.f32 %v1574, %v1798
        %v1800 = vpop.f32.mrb[0].mxu0
        %1801 = vmatprep.mubr.f32.mxu0 %v1167
        %1802 = vmatmul.mubr.f32.gmra.mrb[0].mxu0 %v1227
        %v1803 = vpop.f32.mrb[0].mxu0
        %v1804 = vadd.f32 %v1579, %v1803
        %v1805 = vpop.f32.mrb[0].mxu0
        %1806 = vmatprep.mubr.f32.mxu0 %v1168
        %1807 = vmatmul.mubr.f32.gmra.mrb[0].mxu0 %v1228
        %v1808 = vpop.f32.mrb[0].mxu0
        %v1809 = vadd.f32 %v1584, %v1808
        %v1810 = vpop.f32.mrb[0].mxu0
        %1811 = vmatprep.mubr.f32.mxu0 %v1233
        %1812 = vmatmul.mubr.f32.gmra.mrb[0].mxu0 %v1229
        %v1813 = vpop.f32.mrb[0].mxu0
        %v1814 = vadd.f32 %v1589, %v1813
        %v1815 = vpop.f32.mrb[0].mxu0
        %1816 = vmatprep.mubr.f32.mxu0 %v1234
        %1817 = vmatmul.mubr.f32.gmra.mrb[0].mxu0 %v1230
        %v1818 = vpop.f32.mrb[0].mxu0
        %v1819 = vadd.f32 %v1594, %v1818
        %v1820 = vpop.f32.mrb[0].mxu0
        %1821 = vmatprep.mubr.f32.mxu0 %v1235
        %1822 = vmatmul.mubr.f32.gmra.mrb[0].mxu0 %v1231
        %v1823 = vpop.f32.mrb[0].mxu0
        %v1824 = vadd.f32 %v1599, %v1823
        %v1825 = vpop.f32.mrb[0].mxu0
        %1826 = vmatprep.mubr.f32.mxu0 %v1236
        %1827 = vmatmul.mubr.f32.gmra.mrb[0].mxu0 %v1232
        %v1828 = vpop.f32.mrb[0].mxu0
        %v1829 = vadd.f32 %v1604, %v1828
        %v1830 = vpop.f32.mrb[0].mxu0
        %1831 = vdwg.mxu0
        %1832 = vmatprep.subr.mxu0 0.0
        %1833 = vmatpush1.msra.mxu0 %v1301
        %1834 = vmatprep.subr.mxu0 0.0
        %1835 = vmatpush1.msra.mxu0 %v1302
        %1836 = vmatprep.subr.mxu0 0.0
        %1837 = vmatpush1.msra.mxu0 %v1303
        %1838 = vmatprep.subr.mxu0 0.0
        %1839 = vmatpush1.msra.mxu0 %v1304
        %1840 = vmatprep.subr.mxu0 0.0
        %1841 = vmatpush1.msra.mxu0 %v1305
        %1842 = vmatprep.subr.mxu0 0.0
        %1843 = vmatpush1.msra.mxu0 %v1306
        %1844 = vmatprep.subr.mxu0 0.0
        %1845 = vmatpush1.msra.mxu0 %v1307
        %1846 = vmatprep.subr.mxu0 0.0
        %1847 = vmatpush1.msra.mxu0 %v1308
        %1848 = vmatprep.subr.mxu0 0.0
        %1849 = vmatpush1.msra.mxu0 0.0
        %1850 = vmatprep.subr.mxu0 0.0
        %1851 = vmatpush1.msra.mxu0 0.0
        %1852 = vmatprep.subr.mxu0 0.0
        %1853 = vmatpush1.msra.mxu0 0.0
        %1854 = vmatprep.subr.mxu0 0.0
        %1855 = vmatpush1.msra.mxu0 0.0
        %1856 = vmatprep.subr.mxu0 0.0
        %1857 = vmatpush1.msra.mxu0 0.0
        %1858 = vmatprep.subr.mxu0 0.0
        %1859 = vmatpush1.msra.mxu0 0.0
        %1860 = vmatprep.subr.mxu0 0.0
        %1861 = vmatpush1.msra.mxu0 0.0
        %1862 = vmatprep.subr.mxu0 0.0
        %1863 = vmatpush1.msra.mxu0 0.0
        %1864 = vmatprep.subr.mxu0 0.0
        %1865 = vmatpush1.msra.mxu0 0.0
        %1866 = vmatprep.subr.mxu0 0.0
        %1867 = vmatpush1.msra.mxu0 0.0
        %1868 = vmatprep.subr.mxu0 0.0
        %1869 = vmatpush1.msra.mxu0 0.0
        %1870 = vmatprep.subr.mxu0 0.0
        %1871 = vmatpush1.msra.mxu0 0.0
        %1872 = vmatprep.subr.mxu0 0.0
        %1873 = vmatpush1.msra.mxu0 0.0
        %1874 = vmatprep.subr.mxu0 0.0
        %1875 = vmatpush1.msra.mxu0 0.0
        %1876 = vmatprep.subr.mxu0 0.0
        %1877 = vmatpush1.msra.mxu0 0.0
        %1878 = vmatprep.subr.mxu0 0.0
        %1879 = vmatpush1.msra.mxu0 0.0
        %1880 = vmatprep.subr.mxu0 0.0
        %1881 = vmatpush1.msra.mxu0 0.0
        %1882 = vmatprep.subr.mxu0 0.0
        %1883 = vmatpush1.msra.mxu0 0.0
        %1884 = vmatprep.subr.mxu0 0.0
        %1885 = vmatpush1.msra.mxu0 0.0
        %1886 = vmatprep.subr.mxu0 0.0
        %1887 = vmatpush1.msra.mxu0 0.0
        %1888 = vmatprep.subr.mxu0 0.0
        %1889 = vmatpush1.msra.mxu0 0.0
        %1890 = vmatprep.subr.mxu0 0.0
        %1891 = vmatpush1.msra.mxu0 0.0
        %1892 = vmatprep.subr.mxu0 0.0
        %1893 = vmatpush1.msra.mxu0 0.0
        %1894 = vmatprep.subr.mxu0 0.0
        %1895 = vmatpush1.msra.mxu0 0.0
        %1896 = vmatprep.mubr.f32.mxu0 0.0
        %1897 = vmatmul.mubr.f32.gmra.mrb[0].mxu0 %v1316
        %v1898 = vpop.f32.mrb[0].mxu0
        %v1899 = vadd.f32 %v1674, %v1898
        %v1900 = vpop.f32.mrb[0].mxu0
        %1901 = vmatprep.mubr.f32.mxu0 0.0
        %1902 = vmatmul.mubr.f32.gmra.mrb[0].mxu0 %v1318
        %v1903 = vpop.f32.mrb[0].mxu0
        %v1904 = vadd.f32 %v1679, %v1903
        %v1905 = vpop.f32.mrb[0].mxu0
        %1906 = vmatprep.mubr.f32.mxu0 0.0
        %1907 = vmatmul.mubr.f32.gmra.mrb[0].mxu0 %v1320
        %v1908 = vpop.f32.mrb[0].mxu0
        %v1909 = vadd.f32 %v1684, %v1908
        %v1910 = vpop.f32.mrb[0].mxu0
        %1911 = vmatprep.mubr.f32.mxu0 0.0
        %1912 = vmatmul.mubr.f32.gmra.mrb[0].mxu0 %v1322
        %v1913 = vpop.f32.mrb[0].mxu0
        %v1914 = vadd.f32 %v1689, %v1913
        %v1915 = vpop.f32.mrb[0].mxu0
        %1916 = vmatprep.mubr.f32.mxu0 0.0
        %1917 = vmatmul.mubr.f32.gmra.mrb[0].mxu0 %v1324
        %v1918 = vpop.f32.mrb[0].mxu0
        %v1919 = vadd.f32 %v1694, %v1918
        %v1920 = vpop.f32.mrb[0].mxu0
        %1921 = vmatprep.mubr.f32.mxu0 0.0
        %1922 = vmatmul.mubr.f32.gmra.mrb[0].mxu0 %v1326
        %v1923 = vpop.f32.mrb[0].mxu0
        %v1924 = vadd.f32 %v1699, %v1923
        %v1925 = vpop.f32.mrb[0].mxu0
        %1926 = vmatprep.mubr.f32.mxu0 0.0
        %1927 = vmatmul.mubr.f32.gmra.mrb[0].mxu0 %v1328
        %v1928 = vpop.f32.mrb[0].mxu0
        %v1929 = vadd.f32 %v1704, %v1928
        %v1930 = vpop.f32.mrb[0].mxu0
        %1931 = vmatprep.mubr.f32.mxu0 0.0
        %1932 = vmatmul.mubr.f32.gmra.mrb[0].mxu0 %v1330
        %v1933 = vpop.f32.mrb[0].mxu0
        %v1934 = vadd.f32 %v1709, %v1933
        %v1935 = vpop.f32.mrb[0].mxu0
        %1936 = vmatprep.mubr.f32.mxu0 0.0
        %1937 = vmatmul.mubr.f32.gmra.mrb[0].mxu0 %v1332
        %v1938 = vpop.f32.mrb[0].mxu0
        %v1939 = vadd.f32 %v1714, %v1938
        %v1940 = vpop.f32.mrb[0].mxu0
        %1941 = vmatprep.mubr.f32.mxu0 0.0
        %1942 = vmatmul.mubr.f32.gmra.mrb[0].mxu0 %v1334
        %v1943 = vpop.f32.mrb[0].mxu0
        %v1944 = vadd.f32 %v1719, %v1943
        %v1945 = vpop.f32.mrb[0].mxu0
        %1946 = vmatprep.mubr.f32.mxu0 0.0
        %1947 = vmatmul.mubr.f32.gmra.mrb[0].mxu0 %v1336
        %v1948 = vpop.f32.mrb[0].mxu0
        %v1949 = vadd.f32 %v1724, %v1948
        %v1950 = vpop.f32.mrb[0].mxu0
        %1951 = vmatprep.mubr.f32.mxu0 0.0
        %1952 = vmatmul.mubr.f32.gmra.mrb[0].mxu0 %v1338
        %v1953 = vpop.f32.mrb[0].mxu0
        %v1954 = vadd.f32 %v1729, %v1953
        %v1955 = vpop.f32.mrb[0].mxu0
        %1956 = vmatprep.mubr.f32.mxu0 0.0
        %1957 = vmatmul.mubr.f32.gmra.mrb[0].mxu0 %v1340
        %v1958 = vpop.f32.mrb[0].mxu0
        %v1959 = vadd.f32 %v1734, %v1958
        %v1960 = vpop.f32.mrb[0].mxu0
        %1961 = vmatprep.mubr.f32.mxu0 0.0
        %1962 = vmatmul.mubr.f32.gmra.mrb[0].mxu0 %v1342
        %v1963 = vpop.f32.mrb[0].mxu0
        %v1964 = vadd.f32 %v1739, %v1963
        %v1965 = vpop.f32.mrb[0].mxu0
        %1966 = vmatprep.mubr.f32.mxu0 0.0
        %1967 = vmatmul.mubr.f32.gmra.mrb[0].mxu0 %v1344
        %v1968 = vpop.f32.mrb[0].mxu0
        %v1969 = vadd.f32 %v1744, %v1968
        %v1970 = vpop.f32.mrb[0].mxu0
        %1971 = vmatprep.mubr.f32.mxu0 0.0
        %1972 = vmatmul.mubr.f32.gmra.mrb[0].mxu0 %v1346
        %v1973 = vpop.f32.mrb[0].mxu0
        %v1974 = vadd.f32 %v1749, %v1973
        %v1975 = vpop.f32.mrb[0].mxu0
        %1976 = vmatprep.mubr.f32.mxu0 0.0
        %1977 = vmatmul.mubr.f32.gmra.mrb[0].mxu0 %v1348
        %v1978 = vpop.f32.mrb[0].mxu0
        %v1979 = vadd.f32 %v1754, %v1978
        %v1980 = vpop.f32.mrb[0].mxu0
        %1981 = vmatprep.mubr.f32.mxu0 0.0
        %1982 = vmatmul.mubr.f32.gmra.mrb[0].mxu0 %v1350
        %v1983 = vpop.f32.mrb[0].mxu0
        %v1984 = vadd.f32 %v1759, %v1983
        %v1985 = vpop.f32.mrb[0].mxu0
        %1986 = vmatprep.mubr.f32.mxu0 0.0
        %1987 = vmatmul.mubr.f32.gmra.mrb[0].mxu0 %v1352
        %v1988 = vpop.f32.mrb[0].mxu0
        %v1989 = vadd.f32 %v1764, %v1988
        %v1990 = vpop.f32.mrb[0].mxu0
        %1991 = vmatprep.mubr.f32.mxu0 0.0
        %1992 = vmatmul.mubr.f32.gmra.mrb[0].mxu0 %v1354
        %v1993 = vpop.f32.mrb[0].mxu0
        %v1994 = vadd.f32 %v1769, %v1993
        %v1995 = vpop.f32.mrb[0].mxu0
        %1996 = vmatprep.mubr.f32.mxu0 0.0
        %1997 = vmatmul.mubr.f32.gmra.mrb[0].mxu0 %v1356
        %v1998 = vpop.f32.mrb[0].mxu0
        %v1999 = vadd.f32 %v1774, %v1998
        %v2000 = vpop.f32.mrb[0].mxu0
        %2001 = vmatprep.mubr.f32.mxu0 0.0
        %2002 = vmatmul.mubr.f32.gmra.mrb[0].mxu0 %v1358
        %v2003 = vpop.f32.mrb[0].mxu0
        %v2004 = vadd.f32 %v1779, %v2003
        %v2005 = vpop.f32.mrb[0].mxu0
        %2006 = vmatprep.mubr.f32.mxu0 0.0
        %2007 = vmatmul.mubr.f32.gmra.mrb[0].mxu0 %v1360
        %v2008 = vpop.f32.mrb[0].mxu0
        %v2009 = vadd.f32 %v1784, %v2008
        %v2010 = vpop.f32.mrb[0].mxu0
        %2011 = vmatprep.mubr.f32.mxu0 0.0
        %2012 = vmatmul.mubr.f32.gmra.mrb[0].mxu0 %v1362
        %v2013 = vpop.f32.mrb[0].mxu0
        %v2014 = vadd.f32 %v1789, %v2013
        %v2015 = vpop.f32.mrb[0].mxu0
        %2016 = vmatprep.mubr.f32.mxu0 0.0
        %2017 = vmatmul.mubr.f32.gmra.mrb[0].mxu0 %v1364
        %v2018 = vpop.f32.mrb[0].mxu0
        %v2019 = vadd.f32 %v1794, %v2018
        %v2020 = vpop.f32.mrb[0].mxu0
        %2021 = vmatprep.mubr.f32.mxu0 0.0
        %2022 = vmatmul.mubr.f32.gmra.mrb[0].mxu0 %v1366
        %v2023 = vpop.f32.mrb[0].mxu0
        %v2024 = vadd.f32 %v1799, %v2023
        %v2025 = vpop.f32.mrb[0].mxu0
        %2026 = vmatprep.mubr.f32.mxu0 0.0
        %2027 = vmatmul.mubr.f32.gmra.mrb[0].mxu0 %v1368
        %v2028 = vpop.f32.mrb[0].mxu0
        %v2029 = vadd.f32 %v1804, %v2028
        %v2030 = vpop.f32.mrb[0].mxu0
        %2031 = vmatprep.mubr.f32.mxu0 0.0
        %2032 = vmatmul.mubr.f32.gmra.mrb[0].mxu0 %v1370
        %v2033 = vpop.f32.mrb[0].mxu0
        %v2034 = vadd.f32 %v1809, %v2033
        %v2035 = vpop.f32.mrb[0].mxu0
        %2036 = vmatprep.mubr.f32.mxu0 0.0
        %2037 = vmatmul.mubr.f32.gmra.mrb[0].mxu0 %v1372
        %v2038 = vpop.f32.mrb[0].mxu0
        %v2039 = vadd.f32 %v1814, %v2038
        %v2040 = vpop.f32.mrb[0].mxu0
        %2041 = vmatprep.mubr.f32.mxu0 0.0
        %2042 = vmatmul.mubr.f32.gmra.mrb[0].mxu0 %v1374
        %v2043 = vpop.f32.mrb[0].mxu0
        %v2044 = vadd.f32 %v1819, %v2043
        %v2045 = vpop.f32.mrb[0].mxu0
        %2046 = vmatprep.mubr.f32.mxu0 0.0
        %2047 = vmatmul.mubr.f32.gmra.mrb[0].mxu0 %v1377
        %v2048 = vpop.f32.mrb[0].mxu0
        %v2049 = vadd.f32 %v1824, %v2048
        %v2050 = vpop.f32.mrb[0].mxu0
        %2051 = vmatprep.mubr.f32.mxu0 0.0
        %2052 = vmatmul.mubr.f32.gmra.mrb[0].mxu0 %v1380
        %v2053 = vpop.f32.mrb[0].mxu0
        %v2054 = vadd.f32 %v1829, %v2053
        %v2055 = vpop.f32.mrb[0].mxu0
        %2056 = vdwg.mxu0
        %2057 = vst [vmem:[%s334] sm:$0xff] %v1899
        %2058 = vst [vmem:[%s334 + $0x8] sm:$0xff] %v1904
        %2059 = vst [vmem:[%s334 + $0x10] sm:$0xff] %v1909
        %2060 = vst [vmem:[%s334 + $0x18] sm:$0xff] %v1914
        %2061 = vst [vmem:[%s334 + $0x20] sm:$0xff] %v1919
        %2062 = vst [vmem:[%s334 + $0x28] sm:$0xff] %v1924
        %2063 = vst [vmem:[%s334 + $0x30] sm:$0xff] %v1929
        %2064 = vst [vmem:[%s334 + $0x38] sm:$0xff] %v1934
        %2065 = vst [vmem:[%s334 + $0x40] sm:$0xff] %v1939
        %2066 = vst [vmem:[%s334 + $0x48] sm:$0xff] %v1944
        %2067 = vst [vmem:[%s334 + $0x50] sm:$0xff] %v1949
        %2068 = vst [vmem:[%s334 + $0x58] sm:$0xff] %v1954
        %2069 = vst [vmem:[%s334 + $0x60] sm:$0xff] %v1959
        %2070 = vst [vmem:[%s334 + $0x68] sm:$0xff] %v1964
        %2071 = vst [vmem:[%s334 + $0x70] sm:$0xff] %v1969
        %2072 = vst [vmem:[%s334 + $0x78] sm:$0xff] %v1974
        %2073 = vst [vmem:[%s334 + $0x80] sm:$0xff] %v1979
        %2074 = vst [vmem:[%s334 + $0x88] sm:$0xff] %v1984
        %2075 = vst [vmem:[%s334 + $0x90] sm:$0xff] %v1989
        %2076 = vst [vmem:[%s334 + $0x98] sm:$0xff] %v1994
        %2077 = vst [vmem:[%s334 + $0xa0] sm:$0xff] %v1999
        %2078 = vst [vmem:[%s334 + $0xa8] sm:$0xff] %v2004
        %2079 = vst [vmem:[%s334 + $0xb0] sm:$0xff] %v2009
        %2080 = vst [vmem:[%s334 + $0xb8] sm:$0xff] %v2014
        %2081 = vst [vmem:[%s334 + $0xc0] sm:$0xff] %v2019
        %2082 = vst [vmem:[%s334 + $0xc8] sm:$0xff] %v2024
        %2083 = vst [vmem:[%s334 + $0xd0] sm:$0xff] %v2029
        %2084 = vst [vmem:[%s334 + $0xd8] sm:$0xff] %v2034
        %2085 = vst [vmem:[%s334 + $0xe0] sm:$0xff] %v2039
        %2086 = vst [vmem:[%s334 + $0xe8] sm:$0xff] %v2044
        %2087 = vst [vmem:[%s334 + $0xf0] sm:$0xff] %v2049
        %2088 = vst [vmem:[%s334 + $0xf8] sm:$0xff] %v2054
        %s2089 = sand.u32 %s183, 1
        %s2090 = scalar_lea.sflag [#allocation4], %s2089
        %s2091 = sand.u32 %s183, 1
        %s2092 = smul.addr %s2091, 256
        %s2093 = scalar_lea.vmem [#allocation3], %s2092
        // Predicated region
        $region57: #{channel_upsample_residual.1} parent=39 // pred_check
          %p2094 = pneg %p193
        $region58: #{channel_upsample_residual.1} parent=39 // pred_check_branch
          %2096 = sbr.rel (%p2094) target = $region60
        $region59: #{channel_upsample_residual.1} parent=39 // pred_region
          %s2097 = smul.u32 16, %s24
          %s2099 = ssub.s32 4096, 4096
          %2100 = vsyncadd %s2090, %s2099
          %s2101 = smul.addr %s2097, 2
          %s2102 = smul.addr %s23, 32
          %s2103 = sadd.s32 %s2101, %s2102
          %s2104 = smul.addr %s2103, 128
          %s2105 = scalar_lea.hbm %s5, %s2104
          %s2106 = sshll.u32 %s2093, 4
          %s2107 = int_to_ptr.vmem [resolvable:$true] %s2106
          %2112 = dma.vmem_to_hbm [thread:$0]  %s2107, 4096, %s2105, %s2090, 128, 128, 8
        $region60: #{channel_upsample_residual.1} parent=39 // pred_fallthru
          _
      $region40: #{channel_upsample_residual.1} parent=5 // pred_fallthru
        _
      %p2113 = scmp.le.s32.totalorder 2, %s14
      // Predicated region
      $region61: #{channel_upsample_residual.1} parent=5 // pred_check
        %p2114 = pneg %p2113
      $region62: #{channel_upsample_residual.1} parent=5 // pred_check_branch
        %2116 = sbr.rel (%p2114) target = $region64
      $region63: #{channel_upsample_residual.1} parent=5 // pred_region
        %s2117 = ssub.s32 %s14, 2
        // Predicated region
        $region65: #{channel_upsample_residual.1} parent=63 // pred_check
          %p2118 = pneg %p199
        $region66: #{channel_upsample_residual.1} parent=63 // pred_check_branch
          %2120 = sbr.rel (%p2118) target = $region68
        $region67: #{channel_upsample_residual.1} parent=63 // pred_region
          %s2121 = sand.u32 %s184, 1
          %s2122 = scalar_lea.sflag [#allocation4], %s2121
          %s2123 = sand.u32 %s184, 1
          %s2124 = smul.addr %s2123, 256
          %s2125 = scalar_lea.vmem [#allocation3], %s2124
          %2126 = dma.done %s2122, 4096
        $region68: #{channel_upsample_residual.1} parent=63 // pred_fallthru
          _
      $region64: #{channel_upsample_residual.1} parent=5 // pred_fallthru
        _
    $region6: #{channel_upsample_residual.1} parent=1 // loop_footer
      %s18 = sadd.s32 1, %s14
    $region7: #{channel_upsample_residual.1} parent=1 // loop_footer_branch
      %13 = sbr.rel target = $region3
    $region8: #{channel_upsample_residual.1} parent=1 // loop_exit
      _
    %2127 = vsyncpa [#allocation4], 1
    %s2128 = scalar_lea.sflag [#allocation4], 1
    %2129 = vsyncpa %s2128, 1

</llo_original>
